<compile_context>
chip_gen: v5e
topology: v5e:2x2
jax: 0.10.0
libtpu: 0.0.40
codegen_flags: <defaults>
</compile_context>

<pallas_src>
import functools

import numpy as np
import jax
import jax.numpy as jnp
from jax.experimental import pallas as pl
from jax.experimental.pallas import tpu as pltpu

ALPHA = 0.25
GAMMA = 2.0
EPS = 1e-8          # only used by the pure-JAX reference (matches the torch code)


def _round_up(x, m):
    return (x + m - 1) // m * m


# ----------------------------------------------------------------------------
# Pallas kernel: computes a [TQ, NT_pad] tile of the matching cost matrix.
# ----------------------------------------------------------------------------
def _cost_kernel(logits_ref, bq_ref, bt_ref, onehot_ref, c_ref, *,
                 cost_class_w, cost_bbox_w, cost_giou_w, feat_weights,
                 alpha, gamma):
    bq = bq_ref[...]                          # [TQ, 4]    f32 pred boxes (cxcywh)
    bt = bt_ref[...]                          # [4, NTp]   f32 target boxes (transposed)

    qcx = bq[:, 0:1]; qcy = bq[:, 1:2]; qw = bq[:, 2:3]; qh = bq[:, 3:4]   # [TQ,1]
    tcx = bt[0:1, :]; tcy = bt[1:2, :]; tw = bt[2:3, :]; th = bt[3:4, :]   # [1,NTp]

    # --- L1 cdist over (cx, cy, w, h) --------------------------------------
    cost_bbox = (jnp.abs(qcx - tcx) + jnp.abs(qcy - tcy)
                 + jnp.abs(qw - tw) + jnp.abs(qh - th))                     # [TQ,NTp]

    # --- generalized IoU (cxcywh -> xyxy) ----------------------------------
    qx0 = qcx - 0.5 * qw; qy0 = qcy - 0.5 * qh
    qx1 = qcx + 0.5 * qw; qy1 = qcy + 0.5 * qh
    tx0 = tcx - 0.5 * tw; ty0 = tcy - 0.5 * th
    tx1 = tcx + 0.5 * tw; ty1 = tcy + 0.5 * th

    area_q = (qx1 - qx0) * (qy1 - qy0)                                      # [TQ,1]
    area_t = (tx1 - tx0) * (ty1 - ty0)                                      # [1,NTp]

    iw = jnp.maximum(jnp.minimum(qx1, tx1) - jnp.maximum(qx0, tx0), 0.0)
    ih = jnp.maximum(jnp.minimum(qy1, ty1) - jnp.maximum(qy0, ty0), 0.0)
    inter = iw * ih
    union = jnp.maximum(area_q + area_t - inter, 1e-12)    # NaN guard (degenerate boxes)
    iou = inter / union

    ew = jnp.maximum(jnp.maximum(qx1, tx1) - jnp.minimum(qx0, tx0), 0.0)
    eh = jnp.maximum(jnp.maximum(qy1, ty1) - jnp.minimum(qy0, ty0), 0.0)
    enc = jnp.maximum(ew * eh, 1e-12)                       # NaN guard
    cost_giou = -(iou - (enc - union) / enc)

    # --- focal classification cost: gather FIRST (MXU), focal on [TQ, NTp] --
    cost_classes = jnp.zeros_like(cost_bbox)
    for f, wf in enumerate(feat_weights):
        # one-hot column selection of the raw logits: g[q, t] = logit[q, tgt_ids[t]]
        g = jnp.dot(logits_ref[f], onehot_ref[f],
                    preferred_element_type=jnp.float32)      # bf16 MXU -> f32 [TQ,NTp]
        e = jnp.exp(-g)                                      # EUP
        p = 1.0 / (1.0 + e)                                  # sigmoid (EUP recip)
        nlog_p = jnp.log(1.0 + e)                            # -log(sigmoid(g))   (EUP)
        nlog_1mp = nlog_p + g                                # -log(1-sigmoid(g)) (VPU)
        omp = 1.0 - p
        if gamma == 2.0:
            p_g, omp_g = p * p, omp * omp
        else:                                                # general gamma path
            p_g, omp_g = p ** gamma, omp ** gamma
        delta = alpha * omp_g * nlog_p - (1.0 - alpha) * p_g * nlog_1mp
        cost_classes = cost_classes + wf * delta

    c_ref[...] = (cost_bbox_w * cost_bbox
                  + cost_class_w * cost_classes
                  + cost_giou_w * cost_giou)


# ----------------------------------------------------------------------------
# Wrapper: padding / layout glue in plain JAX, the cost matrix in Pallas.
# ----------------------------------------------------------------------------
def compute_cost_matrix(pred_logits, pred_boxes, tgt_bbox, tgt_ids, *,
                        cost_class=1.0, cost_bbox=1.0, cost_giou=1.0,
                        cost_feats_weight=(1.0,), alpha=ALPHA, gamma=GAMMA,
                        tq=None):
    """pred_logits: [F,B,Q,V] (or [B,Q,V]); pred_boxes: [B,Q,4];
    tgt_bbox: [NT,4]; tgt_ids: [F,NT].  Returns C of shape [B, Q, NT] (f32)."""
    if pred_logits.ndim == 3:                               # 'b q v -> 1 b q v'
        pred_logits = pred_logits[None]
    F, B, Q, V = pred_logits.shape
    NQ = B * Q
    NT = tgt_bbox.shape[0]

    # --- tile / padding geometry -------------------------------------------
    NT_pad = max(128, _round_up(NT, 128))                   # lane-dense output
    nq_min = _round_up(NQ, 16)
    if tq is None:
        tq_cap = 512                                        # big tiles: amortize per-step overhead
        while tq_cap > 16 and 2 * F * tq_cap * V * 2 > (16 << 20):
            tq_cap //= 2                                    # keep dbl-buffered logits modest
        n_steps = max(2 if nq_min > 16 else 1, pl.cdiv(nq_min, tq_cap))  # >=2 steps (v7x megacore)
        tq = _round_up(pl.cdiv(nq_min, n_steps), 16)
    NQ_pad = _round_up(NQ, tq)

    # --- inputs: bf16 logits (halves HBM traffic), f32 boxes ----------------
    logits = pred_logits.reshape(F, NQ, V).astype(jnp.bfloat16)
    if NQ_pad > NQ:
        logits = jnp.pad(logits, ((0, 0), (0, NQ_pad - NQ), (0, 0)))

    pad_box = jnp.array([0.5, 0.5, 0.1, 0.1], jnp.float32)  # valid dummy box for padding
    bq = pred_boxes.reshape(NQ, 4).astype(jnp.float32)
    if NQ_pad > NQ:
        bq = jnp.concatenate([bq, jnp.broadcast_to(pad_box, (NQ_pad - NQ, 4))], axis=0)

    bt = tgt_bbox.astype(jnp.float32)
    if NT_pad > NT:
        bt = jnp.concatenate([bt, jnp.broadcast_to(pad_box, (NT_pad - NT, 4))], axis=0)
    bt = jnp.transpose(bt)                                   # [4, NT_pad]

    # one-hot gather matrix built directly in [F, V, NT_pad] layout (no transpose);
    # padded target columns get id = -1 -> all-zero one-hot -> sliced off below.
    ids = tgt_ids.astype(jnp.int32)
    if NT_pad > NT:
        ids = jnp.pad(ids, ((0, 0), (0, NT_pad - NT)), constant_values=-1)
    onehot = (jnp.arange(V, dtype=jnp.int32)[None, :, None]
              == ids[:, None, :]).astype(jnp.bfloat16)       # [F, V, NT_pad]

    feat_weights = tuple(float(w) for w in cost_feats_weight)
    kernel = functools.partial(
        _cost_kernel,
        cost_class_w=float(cost_class),
        cost_bbox_w=float(cost_bbox),
        cost_giou_w=float(cost_giou),
        feat_weights=feat_weights,
        alpha=float(alpha),
        gamma=float(gamma),
    )

    # advisory cost estimate + VMEM budget (per-generation safe: <= 56 MiB)
    flops = int(2 * len(feat_weights) * NQ_pad * V * NT_pad + 40 * NQ_pad * NT_pad)
    transcendentals = int(3 * len(feat_weights) * NQ_pad * NT_pad)
    bytes_accessed = int(F * NQ_pad * V * 2 + F * V * NT_pad * 2
                         + NQ_pad * 4 * 4 + 4 * NT_pad * 4 + NQ_pad * NT_pad * 4)
    vmem_needed = (2 * F * tq * V * 2          # double-buffered bf16 logits tile
                   + F * V * NT_pad * 2        # resident one-hot
                   + 2 * tq * NT_pad * 4       # double-buffered output tile
                   + 2 * tq * 4 * 4 + 4 * NT_pad * 4)
    vmem_limit = int(min(max(32 << 20, 2 * vmem_needed + (2 << 20)), 56 << 20))

    C = pl.pallas_call(
        kernel,
        out_shape=jax.ShapeDtypeStruct((NQ_pad, NT_pad), jnp.float32),
        grid=(NQ_pad // tq,),
        in_specs=[
            pl.BlockSpec((F, tq, V), lambda i: (0, i, 0)),      # bf16 logits tile
            pl.BlockSpec((tq, 4), lambda i: (i, 0)),            # pred boxes tile
            pl.BlockSpec((4, NT_pad), lambda i: (0, 0)),        # target boxes (resident)
            pl.BlockSpec((F, V, NT_pad), lambda i: (0, 0, 0)),  # one-hot ids (resident)
        ],
        out_specs=pl.BlockSpec((tq, NT_pad), lambda i: (i, 0)),
        compiler_params=pltpu.CompilerParams(
            dimension_semantics=("parallel",),
            vmem_limit_bytes=vmem_limit),
        cost_estimate=pl.CostEstimate(flops=flops,
                                      transcendentals=transcendentals,
                                      bytes_accessed=bytes_accessed),
    )(logits, bq, bt, onehot)

    return C[:NQ, :NT].reshape(B, Q, NT)


# ----------------------------------------------------------------------------
# Host-side assignment (matches torch's linear_sum_assignment usage).
# ----------------------------------------------------------------------------
def _assign(cost):
    # TODO(synk): the Hungarian algorithm is an inherently sequential host-side
    # algorithm with no clean Pallas equivalent; scipy (greedy fallback) here.
    try:
        from scipy.optimize import linear_sum_assignment
        i, j = linear_sum_assignment(cost)
        return np.asarray(i), np.asarray(j)
    except ImportError:
        c = cost.copy().astype(np.float64)
        nq, nt = c.shape
        rows, cols = [], []
        for _ in range(min(nq, nt)):
            r, t = np.unravel_index(np.argmin(c), c.shape)
            rows.append(r); cols.append(t)
            c[r, :] = np.inf; c[:, t] = np.inf
        order = np.argsort(rows)
        return np.asarray(rows)[order], np.asarray(cols)[order]


# ----------------------------------------------------------------------------
# Pure-JAX reference (mirrors the PyTorch forward) used for validation.
# ----------------------------------------------------------------------------
def _reference_cost(pred_logits, pred_boxes, tgt_bbox, tgt_ids,
                    cost_class, cost_bbox_w, cost_giou_w, feat_weights,
                    alpha=ALPHA, gamma=GAMMA):
    F, B, Q, V = pred_logits.shape
    out_bbox = pred_boxes.reshape(-1, 4)
    cost_bbox = jnp.sum(jnp.abs(out_bbox[:, None, :] - tgt_bbox[None, :, :]), -1)

    def to_xyxy(b):
        cx, cy, w, h = b[..., 0], b[..., 1], b[..., 2], b[..., 3]
        return jnp.stack([cx - 0.5 * w, cy - 0.5 * h, cx + 0.5 * w, cy + 0.5 * h], -1)

    b1, b2 = to_xyxy(out_bbox), to_xyxy(tgt_bbox)
    a1 = (b1[:, 2] - b1[:, 0]) * (b1[:, 3] - b1[:, 1])
    a2 = (b2[:, 2] - b2[:, 0]) * (b2[:, 3] - b2[:, 1])
    lt = jnp.maximum(b1[:, None, :2], b2[None, :, :2])
    rb = jnp.minimum(b1[:, None, 2:], b2[None, :, 2:])
    wh = jnp.clip(rb - lt, 0.0)
    inter = wh[..., 0] * wh[..., 1]
    union = a1[:, None] + a2[None, :] - inter
    iou = inter / union
    lt2 = jnp.minimum(b1[:, None, :2], b2[None, :, :2])
    rb2 = jnp.maximum(b1[:, None, 2:], b2[None, :, 2:])
    wh2 = jnp.clip(rb2 - lt2, 0.0)
    enc = wh2[..., 0] * wh2[..., 1]
    cost_giou = -(iou - (enc - union) / enc)

    cost_classes = 0.0
    for f, wf in enumerate(feat_weights):
        p = jax.nn.sigmoid(pred_logits[f].reshape(-1, V))
        neg = (1.0 - alpha) * p ** gamma * (-jnp.log(1.0 - p + EPS))
        pos = alpha * (1.0 - p) ** gamma * (-jnp.log(p + EPS))
        cost_classes = cost_classes + wf * (pos[:, tgt_ids[f]] - neg[:, tgt_ids[f]])

    C = cost_bbox_w * cost_bbox + cost_class * cost_classes + cost_giou_w * cost_giou
    return C.reshape(B, Q, -1)


if __name__ == "__main__":
    # Shapes implied by the module: logits [num_feat, bs, queries, voca]
    F, B, Q, V = 2, 2, 64, 96
    cost_feats_weight = [1.0, 0.5]
    cost_class_w, cost_bbox_w, cost_giou_w = 1.0, 1.0, 1.0
    sizes = [5, 11]                # num_target_boxes per batch element
    NT = sum(sizes)

    key = jax.random.PRNGKey(0)
    k1, k2, k3, k4, k5, k6 = jax.random.split(key, 6)
    pred_logits = jax.random.normal(k1, (F, B, Q, V), jnp.float32)
    # valid cxcywh boxes in (0, 1)
    pred_boxes = jnp.concatenate(
        [jax.random.uniform(k2, (B, Q, 2), minval=0.3, maxval=0.7),
         jax.random.uniform(k3, (B, Q, 2), minval=0.1, maxval=0.3)], axis=-1)
    tgt_bbox = jnp.concatenate(
        [jax.random.uniform(k4, (NT, 2), minval=0.3, maxval=0.7),
         jax.random.uniform(k5, (NT, 2), minval=0.1, maxval=0.3)], axis=-1)
    tgt_ids = jax.random.randint(k6, (F, NT), 0, V)

    C = compute_cost_matrix(
        pred_logits, pred_boxes, tgt_bbox, tgt_ids,
        cost_class=cost_class_w, cost_bbox=cost_bbox_w, cost_giou=cost_giou_w,
        cost_feats_weight=cost_feats_weight)
    C = jax.block_until_ready(C)

    # Reference check: the kernel gathers bf16 logits on the MXU, so compare
    # against the reference evaluated on bf16-rounded logits (deliberate design).
    logits_bf16 = pred_logits.astype(jnp.bfloat16).astype(jnp.float32)
    C_ref = _reference_cost(logits_bf16, pred_boxes, tgt_bbox, tgt_ids,
                            cost_class_w, cost_bbox_w, cost_giou_w,
                            cost_feats_weight)
    np.testing.assert_allclose(np.asarray(C), np.asarray(C_ref), rtol=1e-3, atol=1e-4)

    # per-batch Hungarian assignment on slices of the cost volume (host glue)
    C_np = np.asarray(C)
    indices, off = [], 0
    for b, s in enumerate(sizes):
        i, j = _assign(C_np[b, :, off:off + s])
        indices.append((i.astype(np.int64), j.astype(np.int64)))
        off += s
    assert all(len(i) == len(j) == min(Q, s) for (i, j), s in zip(indices, sizes))

    print("KERNEL_OK")
</pallas_src>

<mosaic_0001>
module attributes {stable_mosaic.version = 11 : i64} {
  func.func @_cost_kernel(%arg0: i32, %arg1: memref<2x64x96xbf16, #tpu.memory_space<vmem>>, %arg2: memref<64x4xf32, #tpu.memory_space<vmem>>, %arg3: memref<4x128xf32, #tpu.memory_space<vmem>>, %arg4: memref<2x96x128xbf16, #tpu.memory_space<vmem>>, %arg5: memref<64x128xf32, #tpu.memory_space<vmem>>) attributes {dimension_semantics = [#tpu.dimension_semantics<parallel>], iteration_bounds = array<i64: 2>, scalar_prefetch = 0 : i64, scratch_operands = 0 : i64, tpu.core_type = #tpu.core_type<tc>, window_params = [{transform_indices = @transform_0, window_bounds = array<i64: 2, 64, 96>}, {transform_indices = @transform_1, window_bounds = array<i64: 64, 4>}, {pipeline_mode = #tpu.pipeline_mode<synchronous>, transform_indices = @transform_2, window_bounds = array<i64: 4, 128>}, {pipeline_mode = #tpu.pipeline_mode<synchronous>, transform_indices = @transform_3, window_bounds = array<i64: 2, 96, 128>}, {transform_indices = @transform_4, window_bounds = array<i64: 64, 128>}]} {
    %c0 = arith.constant 0 : index
    %c0_0 = arith.constant 0 : index
    %0 = vector.load %arg2[%c0, %c0_0] : memref<64x4xf32, #tpu.memory_space<vmem>>, vector<64x4xf32>
    %c0_1 = arith.constant 0 : index
    %c0_2 = arith.constant 0 : index
    %1 = vector.load %arg3[%c0_1, %c0_2] : memref<4x128xf32, #tpu.memory_space<vmem>>, vector<4x128xf32>
    %2 = vector.extract_strided_slice %0 {offsets = [0, 0], sizes = [64, 1], strides = [1, 1]} : vector<64x4xf32> to vector<64x1xf32>
    %3 = vector.extract_strided_slice %0 {offsets = [0, 1], sizes = [64, 1], strides = [1, 1]} : vector<64x4xf32> to vector<64x1xf32>
    %4 = vector.extract_strided_slice %0 {offsets = [0, 2], sizes = [64, 1], strides = [1, 1]} : vector<64x4xf32> to vector<64x1xf32>
    %5 = vector.extract_strided_slice %0 {offsets = [0, 3], sizes = [64, 1], strides = [1, 1]} : vector<64x4xf32> to vector<64x1xf32>
    %6 = vector.extract_strided_slice %1 {offsets = [0, 0], sizes = [1, 128], strides = [1, 1]} : vector<4x128xf32> to vector<1x128xf32>
    %7 = vector.extract_strided_slice %1 {offsets = [1, 0], sizes = [1, 128], strides = [1, 1]} : vector<4x128xf32> to vector<1x128xf32>
    %8 = vector.extract_strided_slice %1 {offsets = [2, 0], sizes = [1, 128], strides = [1, 1]} : vector<4x128xf32> to vector<1x128xf32>
    %9 = vector.extract_strided_slice %1 {offsets = [3, 0], sizes = [1, 128], strides = [1, 1]} : vector<4x128xf32> to vector<1x128xf32>
    %10 = vector.broadcast %2 : vector<64x1xf32> to vector<64x128xf32>
    %11 = vector.broadcast %6 : vector<1x128xf32> to vector<64x128xf32>
    %12 = arith.subf %10, %11 : vector<64x128xf32>
    %13 = math.absf %12 : vector<64x128xf32>
    %14 = vector.broadcast %3 : vector<64x1xf32> to vector<64x128xf32>
    %15 = vector.broadcast %7 : vector<1x128xf32> to vector<64x128xf32>
    %16 = arith.subf %14, %15 : vector<64x128xf32>
    %17 = math.absf %16 : vector<64x128xf32>
    %18 = arith.addf %13, %17 : vector<64x128xf32>
    %19 = vector.broadcast %4 : vector<64x1xf32> to vector<64x128xf32>
    %20 = vector.broadcast %8 : vector<1x128xf32> to vector<64x128xf32>
    %21 = arith.subf %19, %20 : vector<64x128xf32>
    %22 = math.absf %21 : vector<64x128xf32>
    %23 = arith.addf %18, %22 : vector<64x128xf32>
    %24 = vector.broadcast %5 : vector<64x1xf32> to vector<64x128xf32>
    %25 = vector.broadcast %9 : vector<1x128xf32> to vector<64x128xf32>
    %26 = arith.subf %24, %25 : vector<64x128xf32>
    %27 = math.absf %26 : vector<64x128xf32>
    %28 = arith.addf %23, %27 : vector<64x128xf32>
    %cst = arith.constant 5.000000e-01 : f32
    %29 = vector.broadcast %cst : f32 to vector<64x1xf32>
    %30 = arith.mulf %29, %4 : vector<64x1xf32>
    %31 = arith.subf %2, %30 : vector<64x1xf32>
    %cst_3 = arith.constant 5.000000e-01 : f32
    %32 = vector.broadcast %cst_3 : f32 to vector<64x1xf32>
    %33 = arith.mulf %32, %5 : vector<64x1xf32>
    %34 = arith.subf %3, %33 : vector<64x1xf32>
    %cst_4 = arith.constant 5.000000e-01 : f32
    %35 = vector.broadcast %cst_4 : f32 to vector<64x1xf32>
    %36 = arith.mulf %35, %4 : vector<64x1xf32>
    %37 = arith.addf %2, %36 : vector<64x1xf32>
    %cst_5 = arith.constant 5.000000e-01 : f32
    %38 = vector.broadcast %cst_5 : f32 to vector<64x1xf32>
    %39 = arith.mulf %38, %5 : vector<64x1xf32>
    %40 = arith.addf %3, %39 : vector<64x1xf32>
    %cst_6 = arith.constant 5.000000e-01 : f32
    %41 = vector.broadcast %cst_6 : f32 to vector<1x128xf32>
    %42 = arith.mulf %41, %8 : vector<1x128xf32>
    %43 = arith.subf %6, %42 : vector<1x128xf32>
    %cst_7 = arith.constant 5.000000e-01 : f32
    %44 = vector.broadcast %cst_7 : f32 to vector<1x128xf32>
    %45 = arith.mulf %44, %9 : vector<1x128xf32>
    %46 = arith.subf %7, %45 : vector<1x128xf32>
    %cst_8 = arith.constant 5.000000e-01 : f32
    %47 = vector.broadcast %cst_8 : f32 to vector<1x128xf32>
    %48 = arith.mulf %47, %8 : vector<1x128xf32>
    %49 = arith.addf %6, %48 : vector<1x128xf32>
    %cst_9 = arith.constant 5.000000e-01 : f32
    %50 = vector.broadcast %cst_9 : f32 to vector<1x128xf32>
    %51 = arith.mulf %50, %9 : vector<1x128xf32>
    %52 = arith.addf %7, %51 : vector<1x128xf32>
    %53 = arith.subf %37, %31 : vector<64x1xf32>
    %54 = arith.subf %40, %34 : vector<64x1xf32>
    %55 = arith.mulf %53, %54 : vector<64x1xf32>
    %56 = arith.subf %49, %43 : vector<1x128xf32>
    %57 = arith.subf %52, %46 : vector<1x128xf32>
    %58 = arith.mulf %56, %57 : vector<1x128xf32>
    %59 = vector.broadcast %37 : vector<64x1xf32> to vector<64x128xf32>
    %60 = vector.broadcast %49 : vector<1x128xf32> to vector<64x128xf32>
    %61 = arith.minimumf %59, %60 : vector<64x128xf32>
    %62 = vector.broadcast %31 : vector<64x1xf32> to vector<64x128xf32>
    %63 = vector.broadcast %43 : vector<1x128xf32> to vector<64x128xf32>
    %64 = arith.maximumf %62, %63 : vector<64x128xf32>
    %65 = arith.subf %61, %64 : vector<64x128xf32>
    %cst_10 = arith.constant 0.000000e+00 : f32
    %66 = vector.broadcast %cst_10 : f32 to vector<64x128xf32>
    %67 = arith.maximumf %65, %66 : vector<64x128xf32>
    %68 = vector.broadcast %40 : vector<64x1xf32> to vector<64x128xf32>
    %69 = vector.broadcast %52 : vector<1x128xf32> to vector<64x128xf32>
    %70 = arith.minimumf %68, %69 : vector<64x128xf32>
    %71 = vector.broadcast %34 : vector<64x1xf32> to vector<64x128xf32>
    %72 = vector.broadcast %46 : vector<1x128xf32> to vector<64x128xf32>
    %73 = arith.maximumf %71, %72 : vector<64x128xf32>
    %74 = arith.subf %70, %73 : vector<64x128xf32>
    %cst_11 = arith.constant 0.000000e+00 : f32
    %75 = vector.broadcast %cst_11 : f32 to vector<64x128xf32>
    %76 = arith.maximumf %74, %75 : vector<64x128xf32>
    %77 = arith.mulf %67, %76 : vector<64x128xf32>
    %78 = vector.broadcast %55 : vector<64x1xf32> to vector<64x128xf32>
    %79 = vector.broadcast %58 : vector<1x128xf32> to vector<64x128xf32>
    %80 = arith.addf %78, %79 : vector<64x128xf32>
    %81 = arith.subf %80, %77 : vector<64x128xf32>
    %cst_12 = arith.constant 9.99999996E-13 : f32
    %82 = vector.broadcast %cst_12 : f32 to vector<64x128xf32>
    %83 = arith.maximumf %81, %82 : vector<64x128xf32>
    %84 = arith.divf %77, %83 : vector<64x128xf32>
    %85 = vector.broadcast %37 : vector<64x1xf32> to vector<64x128xf32>
    %86 = vector.broadcast %49 : vector<1x128xf32> to vector<64x128xf32>
    %87 = arith.maximumf %85, %86 : vector<64x128xf32>
    %88 = vector.broadcast %31 : vector<64x1xf32> to vector<64x128xf32>
    %89 = vector.broadcast %43 : vector<1x128xf32> to vector<64x128xf32>
    %90 = arith.minimumf %88, %89 : vector<64x128xf32>
    %91 = arith.subf %87, %90 : vector<64x128xf32>
    %cst_13 = arith.constant 0.000000e+00 : f32
    %92 = vector.broadcast %cst_13 : f32 to vector<64x128xf32>
    %93 = arith.maximumf %91, %92 : vector<64x128xf32>
    %94 = vector.broadcast %40 : vector<64x1xf32> to vector<64x128xf32>
    %95 = vector.broadcast %52 : vector<1x128xf32> to vector<64x128xf32>
    %96 = arith.maximumf %94, %95 : vector<64x128xf32>
    %97 = vector.broadcast %34 : vector<64x1xf32> to vector<64x128xf32>
    %98 = vector.broadcast %46 : vector<1x128xf32> to vector<64x128xf32>
    %99 = arith.minimumf %97, %98 : vector<64x128xf32>
    %100 = arith.subf %96, %99 : vector<64x128xf32>
    %cst_14 = arith.constant 0.000000e+00 : f32
    %101 = vector.broadcast %cst_14 : f32 to vector<64x128xf32>
    %102 = arith.maximumf %100, %101 : vector<64x128xf32>
    %103 = arith.mulf %93, %102 : vector<64x128xf32>
    %cst_15 = arith.constant 9.99999996E-13 : f32
    %104 = vector.broadcast %cst_15 : f32 to vector<64x128xf32>
    %105 = arith.maximumf %103, %104 : vector<64x128xf32>
    %106 = arith.subf %105, %83 : vector<64x128xf32>
    %107 = arith.divf %106, %105 : vector<64x128xf32>
    %108 = arith.subf %84, %107 : vector<64x128xf32>
    %cst_16 = arith.constant 0.000000e+00 : f32
    %109 = vector.broadcast %cst_16 : f32 to vector<64x128xf32>
    %110 = arith.subf %109, %108 : vector<64x128xf32>
    %cst_17 = arith.constant 0.000000e+00 : f32
    %111 = vector.broadcast %cst_17 : f32 to vector<64x128xf32>
    %c0_18 = arith.constant 0 : index
    %c0_19 = arith.constant 0 : index
    %c0_20 = arith.constant 0 : index
    %112 = vector.load %arg1[%c0_18, %c0_19, %c0_20] : memref<2x64x96xbf16, #tpu.memory_space<vmem>>, vector<1x64x96xbf16>
    %113 = vector.shape_cast %112 : vector<1x64x96xbf16> to vector<64x96xbf16>
    %c0_21 = arith.constant 0 : index
    %c0_22 = arith.constant 0 : index
    %c0_23 = arith.constant 0 : index
    %114 = vector.load %arg4[%c0_21, %c0_22, %c0_23] : memref<2x96x128xbf16, #tpu.memory_space<vmem>>, vector<1x96x128xbf16>
    %115 = vector.shape_cast %114 : vector<1x96x128xbf16> to vector<96x128xbf16>
    %cst_24 = arith.constant dense<0.000000e+00> : vector<64x128xf32>
    %116 = tpu.matmul %113, %115, %cst_24 {dimension_numbers = #tpu.dot_dimension_numbers<[1], [0], [0], [1], [0, 0, 1, 1], [], []>} : vector<64x96xbf16>, vector<96x128xbf16>, vector<64x128xf32> -> vector<64x128xf32>
    %cst_25 = arith.constant 0.000000e+00 : f32
    %117 = vector.broadcast %cst_25 : f32 to vector<64x128xf32>
    %118 = arith.subf %117, %116 : vector<64x128xf32>
    %119 = math.exp %118 : vector<64x128xf32>
    %cst_26 = arith.constant 1.000000e+00 : f32
    %120 = vector.broadcast %cst_26 : f32 to vector<64x128xf32>
    %121 = arith.addf %120, %119 : vector<64x128xf32>
    %cst_27 = arith.constant 1.000000e+00 : f32
    %122 = vector.broadcast %cst_27 : f32 to vector<64x128xf32>
    %123 = arith.divf %122, %121 : vector<64x128xf32>
    %cst_28 = arith.constant 1.000000e+00 : f32
    %124 = vector.broadcast %cst_28 : f32 to vector<64x128xf32>
    %125 = arith.addf %124, %119 : vector<64x128xf32>
    %126 = math.log %125 : vector<64x128xf32>
    %127 = arith.addf %126, %116 : vector<64x128xf32>
    %cst_29 = arith.constant 1.000000e+00 : f32
    %128 = vector.broadcast %cst_29 : f32 to vector<64x128xf32>
    %129 = arith.subf %128, %123 : vector<64x128xf32>
    %130 = arith.mulf %123, %123 : vector<64x128xf32>
    %131 = arith.mulf %129, %129 : vector<64x128xf32>
    %cst_30 = arith.constant 2.500000e-01 : f32
    %132 = vector.broadcast %cst_30 : f32 to vector<64x128xf32>
    %133 = arith.mulf %132, %131 : vector<64x128xf32>
    %134 = arith.mulf %133, %126 : vector<64x128xf32>
    %cst_31 = arith.constant 7.500000e-01 : f32
    %135 = vector.broadcast %cst_31 : f32 to vector<64x128xf32>
    %136 = arith.mulf %135, %130 : vector<64x128xf32>
    %137 = arith.mulf %136, %127 : vector<64x128xf32>
    %138 = arith.subf %134, %137 : vector<64x128xf32>
    %cst_32 = arith.constant 1.000000e+00 : f32
    %139 = vector.broadcast %cst_32 : f32 to vector<64x128xf32>
    %140 = arith.mulf %139, %138 : vector<64x128xf32>
    %141 = arith.addf %111, %140 : vector<64x128xf32>
    %c1 = arith.constant 1 : index
    %c0_33 = arith.constant 0 : index
    %c0_34 = arith.constant 0 : index
    %142 = vector.load %arg1[%c1, %c0_33, %c0_34] : memref<2x64x96xbf16, #tpu.memory_space<vmem>>, vector<1x64x96xbf16>
    %143 = vector.shape_cast %142 : vector<1x64x96xbf16> to vector<64x96xbf16>
    %c1_35 = arith.constant 1 : index
    %c0_36 = arith.constant 0 : index
    %c0_37 = arith.constant 0 : index
    %144 = vector.load %arg4[%c1_35, %c0_36, %c0_37] : memref<2x96x128xbf16, #tpu.memory_space<vmem>>, vector<1x96x128xbf16>
    %145 = vector.shape_cast %144 : vector<1x96x128xbf16> to vector<96x128xbf16>
    %cst_38 = arith.constant dense<0.000000e+00> : vector<64x128xf32>
    %146 = tpu.matmul %143, %145, %cst_38 {dimension_numbers = #tpu.dot_dimension_numbers<[1], [0], [0], [1], [0, 0, 1, 1], [], []>} : vector<64x96xbf16>, vector<96x128xbf16>, vector<64x128xf32> -> vector<64x128xf32>
    %cst_39 = arith.constant 0.000000e+00 : f32
    %147 = vector.broadcast %cst_39 : f32 to vector<64x128xf32>
    %148 = arith.subf %147, %146 : vector<64x128xf32>
    %149 = math.exp %148 : vector<64x128xf32>
    %cst_40 = arith.constant 1.000000e+00 : f32
    %150 = vector.broadcast %cst_40 : f32 to vector<64x128xf32>
    %151 = arith.addf %150, %149 : vector<64x128xf32>
    %cst_41 = arith.constant 1.000000e+00 : f32
    %152 = vector.broadcast %cst_41 : f32 to vector<64x128xf32>
    %153 = arith.divf %152, %151 : vector<64x128xf32>
    %cst_42 = arith.constant 1.000000e+00 : f32
    %154 = vector.broadcast %cst_42 : f32 to vector<64x128xf32>
    %155 = arith.addf %154, %149 : vector<64x128xf32>
    %156 = math.log %155 : vector<64x128xf32>
    %157 = arith.addf %156, %146 : vector<64x128xf32>
    %cst_43 = arith.constant 1.000000e+00 : f32
    %158 = vector.broadcast %cst_43 : f32 to vector<64x128xf32>
    %159 = arith.subf %158, %153 : vector<64x128xf32>
    %160 = arith.mulf %153, %153 : vector<64x128xf32>
    %161 = arith.mulf %159, %159 : vector<64x128xf32>
    %cst_44 = arith.constant 2.500000e-01 : f32
    %162 = vector.broadcast %cst_44 : f32 to vector<64x128xf32>
    %163 = arith.mulf %162, %161 : vector<64x128xf32>
    %164 = arith.mulf %163, %156 : vector<64x128xf32>
    %cst_45 = arith.constant 7.500000e-01 : f32
    %165 = vector.broadcast %cst_45 : f32 to vector<64x128xf32>
    %166 = arith.mulf %165, %160 : vector<64x128xf32>
    %167 = arith.mulf %166, %157 : vector<64x128xf32>
    %168 = arith.subf %164, %167 : vector<64x128xf32>
    %cst_46 = arith.constant 5.000000e-01 : f32
    %169 = vector.broadcast %cst_46 : f32 to vector<64x128xf32>
    %170 = arith.mulf %169, %168 : vector<64x128xf32>
    %171 = arith.addf %141, %170 : vector<64x128xf32>
    %cst_47 = arith.constant 1.000000e+00 : f32
    %172 = vector.broadcast %cst_47 : f32 to vector<64x128xf32>
    %173 = arith.mulf %172, %28 : vector<64x128xf32>
    %cst_48 = arith.constant 1.000000e+00 : f32
    %174 = vector.broadcast %cst_48 : f32 to vector<64x128xf32>
    %175 = arith.mulf %174, %171 : vector<64x128xf32>
    %176 = arith.addf %173, %175 : vector<64x128xf32>
    %cst_49 = arith.constant 1.000000e+00 : f32
    %177 = vector.broadcast %cst_49 : f32 to vector<64x128xf32>
    %178 = arith.mulf %177, %110 : vector<64x128xf32>
    %179 = arith.addf %176, %178 : vector<64x128xf32>
    %c0_50 = arith.constant 0 : index
    %c0_51 = arith.constant 0 : index
    %180 = vector.load %arg5[%c0_50, %c0_51] : memref<64x128xf32, #tpu.memory_space<vmem>>, vector<64x128xf32>
    tpu.vector_store %arg5[%c0_50, %c0_51], %179 {strides = array<i32>} : memref<64x128xf32, #tpu.memory_space<vmem>>, vector<64x128xf32>,
    return
  }
  func.func @transform_0(%arg0: i32) -> (i32, i32, i32) {
    %c0_i32 = arith.constant 0 : i32
    %c0_i32_0 = arith.constant 0 : i32
    %c0_i32_1 = arith.constant 0 : i32
    return %c0_i32, %arg0, %c0_i32_0 : i32, i32, i32
  }
  func.func @transform_1(%arg0: i32) -> (i32, i32) {
    %c0_i32 = arith.constant 0 : i32
    %c0_i32_0 = arith.constant 0 : i32
    return %arg0, %c0_i32 : i32, i32
  }
  func.func @transform_2(%arg0: i32) -> (i32, i32) {
    %c0_i32 = arith.constant 0 : i32
    %c0_i32_0 = arith.constant 0 : i32
    %c0_i32_1 = arith.constant 0 : i32
    return %c0_i32, %c0_i32_0 : i32, i32
  }
  func.func @transform_3(%arg0: i32) -> (i32, i32, i32) {
    %c0_i32 = arith.constant 0 : i32
    %c0_i32_0 = arith.constant 0 : i32
    %c0_i32_1 = arith.constant 0 : i32
    %c0_i32_2 = arith.constant 0 : i32
    return %c0_i32, %c0_i32_0, %c0_i32_1 : i32, i32, i32
  }
  func.func @transform_4(%arg0: i32) -> (i32, i32) {
    %c0_i32 = arith.constant 0 : i32
    %c0_i32_0 = arith.constant 0 : i32
    return %arg0, %c0_i32 : i32, i32
  }
}

</mosaic_0001>

<llo_original>
// kernel: tpu_custom_call.1
$region0: #{tpu_custom_call.1}
  #allocation0 [shape = 'u32[]', space=smem, size = 0x4, offset = 0x4, fixed_abs, tag = 'smem constant byte address 0x4 - core index']
  #allocation1 [shape = 'u32[72,128]{1,0:T(1,128)}', space=vmem, size = 0x9000, scoped, tag = 'internal scratch']
  %s0 = inlined_call_operand.vmem [shape: bf16[2,128,96], index: 0, kind: input, shape index: {}]
  %s1 = inlined_call_operand.vmem [shape: f32[128,4], index: 1, kind: input, shape index: {}]
  %s2 = inlined_call_operand.vmem [shape: f32[4,128], index: 2, kind: input, shape index: {}]
  %s3 = inlined_call_operand.vmem [shape: bf16[2,96,128], index: 3, kind: input, shape index: {}]
  %s4 = inlined_call_operand.hbm [shape: f32[128,128], index: 4, kind: output, shape index: {}]
  %s5 = sld [smem:[#allocation0]]
  $region90: #{tpu_custom_call.1} parent=0
    _
  %s7 = ssub.s32 1, %s5
  %s8 = scalar_select 0, %s7, %s5
  $region1: #{tpu_custom_call.1} parent=0
    #allocation2 [shape = 'u8[65536]{0}', space=vmem, size = 0x10000, scoped, tag = 'input window, operand 0']
    #allocation3 [shape = 'u8[65536]{0}', space=vmem, size = 0x10000, scoped, tag = 'output window, operand 0']
    #allocation4 [shape = 's32[2]{0}', space=sflag, size = 0x8, scoped, tag = 'scoped memory for tpu_custom_call.1']
    %9 = vsyncpa [#allocation4], 0
    %s10 = scalar_lea.sflag [#allocation4], 1
    %11 = vsyncpa %s10, 0
    loop: start=0, step=1, limit=4
    $region2: #{tpu_custom_call.1} parent=1 // loop_pre_header
      _
    $region3: #{tpu_custom_call.1} parent=1 // loop_header
      %s13 = sphi 0, %s17
      %p14 = scmp.ge.s32.totalorder %s13, 4
      %s23 = sphi 0, %s25
      %s26 = sphi 0, %s23
      %s27 = sphi 0, %s26
      %s43 = sphi 0, %s27
      %s49 = sphi 0, %s51
      %s52 = sphi 0, %s49
      %s53 = sphi 0, %s52
      %s69 = sphi 0, %s53
      %s73 = sphi 0, %s73
      %s75 = sphi 0, %s73
      %s76 = sphi 0, %s75
      %s90 = sphi 0, %s76
      %s94 = sphi 0, %s94
      %s96 = sphi 0, %s94
      %s97 = sphi 0, %s96
      %s111 = sphi 0, %s97
      %s117 = sphi 0, %s119
      %s120 = sphi 0, %s117
      %s121 = sphi 0, %s120
      %s137 = sphi 0, %s121
    $region4: #{tpu_custom_call.1} parent=1 // loop_header_branch
      %16 = sbr.rel (%p14) target = $region8
    $region5: #{tpu_custom_call.1} parent=1 // loop_body
      %s18 = ssub.s32 %s13, 1
      %s19 = ssub.s32 %s13, 2
      %s20 = sadd.s32 %s13, 1
      %s21 = ssub.s32 %s13, %s20
      %p22 = scmp.eq.s32.totalorder %s21, 0
      %s24 = sadd.s32 %s23, 1
      %s25 = scalar_select %p22, %s23, %s24
      %p28 = pneg %p22
      %p29 = scmp.eq.s32.totalorder %s13, 1
      %p30 = por %p28, %p29
      %p31 = scmp.ne.s32.totalorder %s23, %s26
      %p32 = scmp.eq.s32.totalorder %s13, 0
      %p33 = por %p31, %p32
      %p34 = scmp.ne.s32.totalorder %s23, %s26
      %p35 = scmp.eq.s32.totalorder %s18, 1
      %p36 = por %p34, %p35
      %p37 = scmp.ne.s32.totalorder %s26, %s27
      %p38 = scmp.eq.s32.totalorder %s18, 0
      %p39 = por %p37, %p38
      %p40 = scmp.ne.s32.totalorder %s26, %s27
      %p41 = scmp.eq.s32.totalorder %s19, 1
      %p42 = por %p40, %p41
      %p44 = scmp.ne.s32.totalorder %s27, %s43
      %p45 = scmp.eq.s32.totalorder %s19, 0
      %p46 = por %p44, %p45
      %s47 = ssub.s32 %s13, %s20
      %p48 = scmp.eq.s32.totalorder %s47, 0
      %s50 = sadd.s32 %s49, 1
      %s51 = scalar_select %p48, %s49, %s50
      %p54 = pneg %p48
      %p55 = scmp.eq.s32.totalorder %s13, 1
      %p56 = por %p54, %p55
      %p57 = scmp.ne.s32.totalorder %s49, %s52
      %p58 = scmp.eq.s32.totalorder %s13, 0
      %p59 = por %p57, %p58
      %p60 = scmp.ne.s32.totalorder %s49, %s52
      %p61 = scmp.eq.s32.totalorder %s18, 1
      %p62 = por %p60, %p61
      %p63 = scmp.ne.s32.totalorder %s52, %s53
      %p64 = scmp.eq.s32.totalorder %s18, 0
      %p65 = por %p63, %p64
      %p66 = scmp.ne.s32.totalorder %s52, %s53
      %p67 = scmp.eq.s32.totalorder %s19, 1
      %p68 = por %p66, %p67
      %p70 = scmp.ne.s32.totalorder %s53, %s69
      %p71 = scmp.eq.s32.totalorder %s19, 0
      %p72 = por %p70, %p71
      %s74 = sadd.s32 %s73, 1
      %p77 = scmp.eq.s32.totalorder %s13, 1
      %p78 = scmp.ne.s32.totalorder %s73, %s75
      %p79 = scmp.eq.s32.totalorder %s13, 0
      %p80 = por %p78, %p79
      %p81 = scmp.ne.s32.totalorder %s73, %s75
      %p82 = scmp.eq.s32.totalorder %s18, 1
      %p83 = por %p81, %p82
      %p84 = scmp.ne.s32.totalorder %s75, %s76
      %p85 = scmp.eq.s32.totalorder %s18, 0
      %p86 = por %p84, %p85
      %p87 = scmp.ne.s32.totalorder %s75, %s76
      %p88 = scmp.eq.s32.totalorder %s19, 1
      %p89 = por %p87, %p88
      %p91 = scmp.ne.s32.totalorder %s76, %s90
      %p92 = scmp.eq.s32.totalorder %s19, 0
      %p93 = por %p91, %p92
      %s95 = sadd.s32 %s94, 1
      %p98 = scmp.eq.s32.totalorder %s13, 1
      %p99 = scmp.ne.s32.totalorder %s94, %s96
      %p100 = scmp.eq.s32.totalorder %s13, 0
      %p101 = por %p99, %p100
      %p102 = scmp.ne.s32.totalorder %s94, %s96
      %p103 = scmp.eq.s32.totalorder %s18, 1
      %p104 = por %p102, %p103
      %p105 = scmp.ne.s32.totalorder %s96, %s97
      %p106 = scmp.eq.s32.totalorder %s18, 0
      %p107 = por %p105, %p106
      %p108 = scmp.ne.s32.totalorder %s96, %s97
      %p109 = scmp.eq.s32.totalorder %s19, 1
      %p110 = por %p108, %p109
      %p112 = scmp.ne.s32.totalorder %s97, %s111
      %p113 = scmp.eq.s32.totalorder %s19, 0
      %p114 = por %p112, %p113
      %s115 = ssub.s32 %s13, %s20
      %p116 = scmp.eq.s32.totalorder %s115, 0
      %s118 = sadd.s32 %s117, 1
      %s119 = scalar_select %p116, %s117, %s118
      %p122 = pneg %p116
      %p123 = scmp.eq.s32.totalorder %s13, 1
      %p124 = por %p122, %p123
      %p125 = scmp.ne.s32.totalorder %s117, %s120
      %p126 = scmp.eq.s32.totalorder %s13, 0
      %p127 = por %p125, %p126
      %p128 = scmp.ne.s32.totalorder %s117, %s120
      %p129 = scmp.eq.s32.totalorder %s18, 1
      %p130 = por %p128, %p129
      %p131 = scmp.ne.s32.totalorder %s120, %s121
      %p132 = scmp.eq.s32.totalorder %s18, 0
      %p133 = por %p131, %p132
      %p134 = scmp.ne.s32.totalorder %s120, %s121
      %p135 = scmp.eq.s32.totalorder %s19, 1
      %p136 = por %p134, %p135
      %p138 = scmp.ne.s32.totalorder %s121, %s137
      %p139 = scmp.eq.s32.totalorder %s19, 0
      %p140 = por %p138, %p139
      %p141 = scmp.le.s32.totalorder 1, %s13
      %p142 = scmp.lt.s32.totalorder %s13, 3
      %p143 = pnand %p141, %p142
      %p144 = pneg %p143
      // Predicated region
      $region9: #{tpu_custom_call.1} parent=5 // pred_check
        _
      $region10: #{tpu_custom_call.1} parent=5 // pred_check_branch
        %146 = sbr.rel (%p143) target = $region12
      $region11: #{tpu_custom_call.1} parent=5 // pred_region
        %s147 = ssub.s32 %s13, 1
        // Predicated region
        $region13: #{tpu_custom_call.1} parent=11 // pred_check
          %p148 = pneg %p86
        $region14: #{tpu_custom_call.1} parent=11 // pred_check_branch
          %150 = sbr.rel (%p148) target = $region16
        $region15: #{tpu_custom_call.1} parent=11 // pred_region
          _
        $region16: #{tpu_custom_call.1} parent=11 // pred_fallthru
          _
        // Predicated region
        $region17: #{tpu_custom_call.1} parent=11 // pred_check
          %p151 = pneg %p107
        $region18: #{tpu_custom_call.1} parent=11 // pred_check_branch
          %153 = sbr.rel (%p151) target = $region20
        $region19: #{tpu_custom_call.1} parent=11 // pred_region
          _
        $region20: #{tpu_custom_call.1} parent=11 // pred_fallthru
          _
      $region12: #{tpu_custom_call.1} parent=5 // pred_fallthru
        _
      %p154 = scmp.lt.s32.totalorder %s13, 2
      // Predicated region
      $region21: #{tpu_custom_call.1} parent=5 // pred_check
        %p155 = pneg %p154
      $region22: #{tpu_custom_call.1} parent=5 // pred_check_branch
        %157 = sbr.rel (%p155) target = $region24
      $region23: #{tpu_custom_call.1} parent=5 // pred_region
        // Predicated region
        $region25: #{tpu_custom_call.1} parent=23 // pred_check
          %p158 = pneg %p33
        $region26: #{tpu_custom_call.1} parent=23 // pred_check_branch
          %160 = sbr.rel (%p158) target = $region28
        $region27: #{tpu_custom_call.1} parent=23 // pred_region
          %s161 = sand.u32 %s23, 1
          %s162 = sand.u32 %s23, 1
          %s163 = smul.addr %s162, 64
          %s164 = scalar_lea.vmem [#allocation2], %s163
          %s165 = smul.u32 8, %s13
          %s166 = smul.addr %s165, 4
          %s167 = scalar_lea.vmem %s0, %s166
          // Predicated region
          $region29: #{tpu_custom_call.1} parent=27 // pred_check
            _
          $region30: #{tpu_custom_call.1} parent=27 // pred_check_branch
            %169 = sbr.rel (0) target = $region32
          $region31: #{tpu_custom_call.1} parent=27 // pred_region
            // Predicated region
            $region33: #{tpu_custom_call.1} parent=31 // pred_check
              _
            $region34: #{tpu_custom_call.1} parent=31 // pred_check_branch
              %171 = sbr.rel target = $region36
            $region35: #{tpu_custom_call.1} parent=31 // pred_region
              // Predicated region
              $region48: #{tpu_custom_call.1} parent=35 // pred_check
                _
              $region49: #{tpu_custom_call.1} parent=35 // pred_check_branch
                %217 = sbr.rel (0) target = $region51
              $region50: #{tpu_custom_call.1} parent=35 // pred_region
                loop: start=0, step=1, limit=1
                $region52: #{tpu_custom_call.1} parent=50 // loop_pre_header
                  _
                $region53: #{tpu_custom_call.1} parent=50 // loop_header
                  %s219 = sphi 0, %s223
                  %p220 = scmp.ge.s32.totalorder %s219, 1
                  %s224 = sphi %s167, %s167
                  %s225 = sphi %s164, %s164
                $region54: #{tpu_custom_call.1} parent=50 // loop_header_branch
                  %222 = sbr.rel (%p220) target = $region58
                $region55: #{tpu_custom_call.1} parent=50 // loop_body
                  _
                $region56: #{tpu_custom_call.1} parent=50 // loop_footer
                  %s223 = sadd.s32 1, %s219
                $region57: #{tpu_custom_call.1} parent=50 // loop_footer_branch
                  %218 = sbr.rel target = $region53
                $region58: #{tpu_custom_call.1} parent=50 // loop_exit
                  _
                %s227 = ssub.s32 16, 1
                loop: start=0, step=1, limit=1
                $region59: #{tpu_custom_call.1} parent=50 // loop_pre_header
                  _
                $region60: #{tpu_custom_call.1} parent=50 // loop_header
                  %s229 = sphi 0, %s233
                  %p230 = scmp.ge.s32.totalorder %s229, 1
                  %s234 = sphi %s167, %s167
                  %s235 = sphi %s164, %s164
                $region61: #{tpu_custom_call.1} parent=50 // loop_header_branch
                  %232 = sbr.rel (%p230) target = $region65
                $region62: #{tpu_custom_call.1} parent=50 // loop_body
                  %v236 = vld [vmem:[%s234] sm:%s227]
                  %237 = vst [vmem:[%s235] sm:%s227] %v236
                  %v238 = vld [vmem:[%s234 + $0x4] sm:%s227]
                  %239 = vst [vmem:[%s235 + $0x4] sm:%s227] %v238
                  %v240 = vld [vmem:[%s234 + $0x8] sm:%s227]
                  %241 = vst [vmem:[%s235 + $0x8] sm:%s227] %v240
                  %v242 = vld [vmem:[%s234 + $0xc] sm:%s227]
                  %243 = vst [vmem:[%s235 + $0xc] sm:%s227] %v242
                  %v244 = vld [vmem:[%s234 + $0x10] sm:%s227]
                  %245 = vst [vmem:[%s235 + $0x10] sm:%s227] %v244
                  %v246 = vld [vmem:[%s234 + $0x14] sm:%s227]
                  %247 = vst [vmem:[%s235 + $0x14] sm:%s227] %v246
                  %v248 = vld [vmem:[%s234 + $0x18] sm:%s227]
                  %249 = vst [vmem:[%s235 + $0x18] sm:%s227] %v248
                  %v250 = vld [vmem:[%s234 + $0x1c] sm:%s227]
                  %251 = vst [vmem:[%s235 + $0x1c] sm:%s227] %v250
                  %v252 = vld [vmem:[%s234 + $0x40] sm:%s227]
                  %253 = vst [vmem:[%s235 + $0x20] sm:%s227] %v252
                  %v254 = vld [vmem:[%s234 + $0x44] sm:%s227]
                  %255 = vst [vmem:[%s235 + $0x24] sm:%s227] %v254
                  %v256 = vld [vmem:[%s234 + $0x48] sm:%s227]
                  %257 = vst [vmem:[%s235 + $0x28] sm:%s227] %v256
                  %v258 = vld [vmem:[%s234 + $0x4c] sm:%s227]
                  %259 = vst [vmem:[%s235 + $0x2c] sm:%s227] %v258
                  %v260 = vld [vmem:[%s234 + $0x50] sm:%s227]
                  %261 = vst [vmem:[%s235 + $0x30] sm:%s227] %v260
                  %v262 = vld [vmem:[%s234 + $0x54] sm:%s227]
                  %263 = vst [vmem:[%s235 + $0x34] sm:%s227] %v262
                  %v264 = vld [vmem:[%s234 + $0x58] sm:%s227]
                  %265 = vst [vmem:[%s235 + $0x38] sm:%s227] %v264
                  %v266 = vld [vmem:[%s234 + $0x5c] sm:%s227]
                  %267 = vst [vmem:[%s235 + $0x3c] sm:%s227] %v266
                $region63: #{tpu_custom_call.1} parent=50 // loop_footer
                  %s233 = sadd.s32 1, %s229
                $region64: #{tpu_custom_call.1} parent=50 // loop_footer_branch
                  %228 = sbr.rel target = $region60
                $region65: #{tpu_custom_call.1} parent=50 // loop_exit
                  _
              $region51: #{tpu_custom_call.1} parent=35 // pred_fallthru
                _
            $region36: #{tpu_custom_call.1} parent=31 // pred_fallthru
              _
            // Predicated region
            $region37: #{tpu_custom_call.1} parent=31 // pred_check
              _
            $region38: #{tpu_custom_call.1} parent=31 // pred_check_branch
              %173 = sbr.rel (0) target = $region40
            $region39: #{tpu_custom_call.1} parent=31 // pred_region
              %s175 = ssub.s32 16, 1
              loop: start=0, step=1, limit=1
              $region41: #{tpu_custom_call.1} parent=39 // loop_pre_header
                _
              $region42: #{tpu_custom_call.1} parent=39 // loop_header
                %s177 = sphi 0, %s181
                %p178 = scmp.ge.s32.totalorder %s177, 1
                %s182 = sphi %s167, %s167
                %s183 = sphi %s164, %s164
              $region43: #{tpu_custom_call.1} parent=39 // loop_header_branch
                %180 = sbr.rel (%p178) target = $region47
              $region44: #{tpu_custom_call.1} parent=39 // loop_body
                %v184 = vld [vmem:[%s182] sm:%s175]
                %185 = vst [vmem:[%s183] sm:%s175] %v184
                %v186 = vld [vmem:[%s182 + $0x4] sm:%s175]
                %187 = vst [vmem:[%s183 + $0x4] sm:%s175] %v186
                %v188 = vld [vmem:[%s182 + $0x8] sm:%s175]
                %189 = vst [vmem:[%s183 + $0x8] sm:%s175] %v188
                %v190 = vld [vmem:[%s182 + $0xc] sm:%s175]
                %191 = vst [vmem:[%s183 + $0xc] sm:%s175] %v190
                %v192 = vld [vmem:[%s182 + $0x10] sm:%s175]
                %193 = vst [vmem:[%s183 + $0x10] sm:%s175] %v192
                %v194 = vld [vmem:[%s182 + $0x14] sm:%s175]
                %195 = vst [vmem:[%s183 + $0x14] sm:%s175] %v194
                %v196 = vld [vmem:[%s182 + $0x18] sm:%s175]
                %197 = vst [vmem:[%s183 + $0x18] sm:%s175] %v196
                %v198 = vld [vmem:[%s182 + $0x1c] sm:%s175]
                %199 = vst [vmem:[%s183 + $0x1c] sm:%s175] %v198
                %v200 = vld [vmem:[%s182 + $0x40] sm:%s175]
                %201 = vst [vmem:[%s183 + $0x20] sm:%s175] %v200
                %v202 = vld [vmem:[%s182 + $0x44] sm:%s175]
                %203 = vst [vmem:[%s183 + $0x24] sm:%s175] %v202
                %v204 = vld [vmem:[%s182 + $0x48] sm:%s175]
                %205 = vst [vmem:[%s183 + $0x28] sm:%s175] %v204
                %v206 = vld [vmem:[%s182 + $0x4c] sm:%s175]
                %207 = vst [vmem:[%s183 + $0x2c] sm:%s175] %v206
                %v208 = vld [vmem:[%s182 + $0x50] sm:%s175]
                %209 = vst [vmem:[%s183 + $0x30] sm:%s175] %v208
                %v210 = vld [vmem:[%s182 + $0x54] sm:%s175]
                %211 = vst [vmem:[%s183 + $0x34] sm:%s175] %v210
                %v212 = vld [vmem:[%s182 + $0x58] sm:%s175]
                %213 = vst [vmem:[%s183 + $0x38] sm:%s175] %v212
                %v214 = vld [vmem:[%s182 + $0x5c] sm:%s175]
                %215 = vst [vmem:[%s183 + $0x3c] sm:%s175] %v214
              $region45: #{tpu_custom_call.1} parent=39 // loop_footer
                %s181 = sadd.s32 1, %s177
              $region46: #{tpu_custom_call.1} parent=39 // loop_footer_branch
                %176 = sbr.rel target = $region42
              $region47: #{tpu_custom_call.1} parent=39 // loop_exit
                _
            $region40: #{tpu_custom_call.1} parent=31 // pred_fallthru
              _
          $region32: #{tpu_custom_call.1} parent=27 // pred_fallthru
            _
          %268 = vnop
        $region28: #{tpu_custom_call.1} parent=23 // pred_fallthru
          _
        // Predicated region
        $region66: #{tpu_custom_call.1} parent=23 // pred_check
          %p269 = pneg %p59
        $region67: #{tpu_custom_call.1} parent=23 // pred_check_branch
          %271 = sbr.rel (%p269) target = $region69
        $region68: #{tpu_custom_call.1} parent=23 // pred_region
          %s272 = smul.u32 8, %s13
          %p273 = scmp.lt.s32.totalorder %s272, 15
          %s274 = scalar_select %p273, %s272, 15
          %s275 = smul.addr %s274, 8
          %s276 = scalar_lea.vmem %s1, %s275
          %s277 = smul.u32 8, %s13
        $region69: #{tpu_custom_call.1} parent=23 // pred_fallthru
          _
      $region24: #{tpu_custom_call.1} parent=5 // pred_fallthru
        _
      %p278 = scmp.le.s32.totalorder 1, %s13
      %p279 = scmp.lt.s32.totalorder %s13, 3
      %p280 = pnand %p278, %p279
      %p281 = pneg %p280
      // Predicated region
      $region70: #{tpu_custom_call.1} parent=5 // pred_check
        _
      $region71: #{tpu_custom_call.1} parent=5 // pred_check_branch
        %283 = sbr.rel (%p280) target = $region73
      $region72: #{tpu_custom_call.1} parent=5 // pred_region
        %s284 = ssub.s32 %s13, 1
        %s285 = sand.u32 %s26, 1
        %s286 = sand.u32 %s26, 1
        %s287 = smul.addr %s286, 64
        %s288 = scalar_lea.vmem [#allocation2], %s287
        // Predicated region
        $region74: #{tpu_custom_call.1} parent=72 // pred_check
          %p289 = pneg %p39
        $region75: #{tpu_custom_call.1} parent=72 // pred_check_branch
          %291 = sbr.rel (%p289) target = $region77
        $region76: #{tpu_custom_call.1} parent=72 // pred_region
          _
        $region77: #{tpu_custom_call.1} parent=72 // pred_fallthru
          _
        %s292 = sand.u32 %s26, 1
        %s293 = sand.u32 %s26, 1
        %s294 = smul.addr %s293, 64
        %s295 = scalar_lea.vmem [#allocation2], %s294
        %p296 = pneg %p39
        %p297 = pneg %p36
        %s298 = smul.u32 8, %s18
        %p299 = scmp.lt.s32.totalorder %s298, 15
        %s300 = scalar_select %p299, %s298, 15
        %s301 = smul.addr %s300, 8
        %s302 = scalar_lea.vmem %s1, %s301
        %p303 = pneg %p65
        %p304 = pneg %p62
        %p305 = pneg %p86
        %p306 = pneg %p83
        %p307 = pneg %p107
        %p308 = pneg %p104
        %p309 = pneg %p133
        %p310 = pneg %p130
        %s311 = sand.u32 %s120, 1
        %s312 = scalar_lea.sflag [#allocation4], %s311
        %s313 = sand.u32 %s120, 1
        %s314 = smul.addr %s313, 64
        %s315 = scalar_lea.vmem [#allocation3], %s314
        %s316 = smul.u32 8, %s18
        %s317 = smul.u32 8, %s18
        %p318 = scmp.lt.s32.totalorder %s317, 15
        %s319 = scalar_select %p318, %s317, 15
        %s320 = smul.addr %s319, 8
        %s321 = scalar_lea.vmem %s1, %s320
        %s322 = smul.u32 8, %s18
        %s323 = smul.u32 8, %s18
        %v325 = vld [vmem:[%s321] sm:$0xff]
        %v326 = vld [vmem:[%s321 + $0x8] sm:$0xff]
        %v327 = vld [vmem:[%s321 + $0x10] sm:$0xff]
        %v328 = vld [vmem:[%s321 + $0x18] sm:$0xff]
        %v329 = vld [vmem:[%s321 + $0x20] sm:$0xff]
        %v330 = vld [vmem:[%s321 + $0x28] sm:$0xff]
        %v331 = vld [vmem:[%s321 + $0x30] sm:$0xff]
        %v332 = vld [vmem:[%s321 + $0x38] sm:$0xff]
        %v333 = vld [vmem:[%s2] sm:$0xf]
        %335 = vset.pattern.permute.xlu0 0
        %336 = vperm.xlu0 %335, %v325
        %v337 = vpop.permute.xlu0 %336
        %340 = vset.pattern.permute.xlu0 0
        %341 = vperm.xlu0 %340, %v326
        %v342 = vpop.permute.xlu0 %341
        %345 = vset.pattern.permute.xlu0 0
        %346 = vperm.xlu0 %345, %v327
        %v347 = vpop.permute.xlu0 %346
        %350 = vset.pattern.permute.xlu0 0
        %351 = vperm.xlu0 %350, %v328
        %v352 = vpop.permute.xlu0 %351
        %355 = vset.pattern.permute.xlu0 0
        %356 = vperm.xlu0 %355, %v329
        %v357 = vpop.permute.xlu0 %356
        %360 = vset.pattern.permute.xlu0 0
        %361 = vperm.xlu0 %360, %v330
        %v362 = vpop.permute.xlu0 %361
        %365 = vset.pattern.permute.xlu0 0
        %366 = vperm.xlu0 %365, %v331
        %v367 = vpop.permute.xlu0 %366
        %370 = vset.pattern.permute.xlu0 0
        %371 = vperm.xlu0 %370, %v332
        %v372 = vpop.permute.xlu0 %371
        %v374 = vperm.slane %v333, 0
        %v375 = vsub.f32 %v337, %v374
        %v376 = vsub.f32 %v342, %v374
        %v377 = vsub.f32 %v347, %v374
        %v378 = vsub.f32 %v352, %v374
        %v379 = vsub.f32 %v357, %v374
        %v380 = vsub.f32 %v362, %v374
        %v381 = vsub.f32 %v367, %v374
        %v382 = vsub.f32 %v372, %v374
        %v383 = vand.u32 2147483647, %v375
        %v384 = vand.u32 2147483647, %v376
        %v385 = vand.u32 2147483647, %v377
        %v386 = vand.u32 2147483647, %v378
        %v387 = vand.u32 2147483647, %v379
        %v388 = vand.u32 2147483647, %v380
        %v389 = vand.u32 2147483647, %v381
        %v390 = vand.u32 2147483647, %v382
        %391 = vset.pattern.permute.xlu0 1
        %392 = vperm.xlu0 %391, %v325
        %v393 = vpop.permute.xlu0 %392
        %395 = vset.pattern.permute.xlu0 1
        %396 = vperm.xlu0 %395, %v326
        %v397 = vpop.permute.xlu0 %396
        %399 = vset.pattern.permute.xlu0 1
        %400 = vperm.xlu0 %399, %v327
        %v401 = vpop.permute.xlu0 %400
        %403 = vset.pattern.permute.xlu0 1
        %404 = vperm.xlu0 %403, %v328
        %v405 = vpop.permute.xlu0 %404
        %407 = vset.pattern.permute.xlu0 1
        %408 = vperm.xlu0 %407, %v329
        %v409 = vpop.permute.xlu0 %408
        %411 = vset.pattern.permute.xlu0 1
        %412 = vperm.xlu0 %411, %v330
        %v413 = vpop.permute.xlu0 %412
        %415 = vset.pattern.permute.xlu0 1
        %416 = vperm.xlu0 %415, %v331
        %v417 = vpop.permute.xlu0 %416
        %419 = vset.pattern.permute.xlu0 1
        %420 = vperm.xlu0 %419, %v332
        %v421 = vpop.permute.xlu0 %420
        %v423 = vperm.slane %v333, 1
        %v424 = vsub.f32 %v393, %v423
        %v425 = vsub.f32 %v397, %v423
        %v426 = vsub.f32 %v401, %v423
        %v427 = vsub.f32 %v405, %v423
        %v428 = vsub.f32 %v409, %v423
        %v429 = vsub.f32 %v413, %v423
        %v430 = vsub.f32 %v417, %v423
        %v431 = vsub.f32 %v421, %v423
        %v432 = vand.u32 2147483647, %v424
        %v433 = vand.u32 2147483647, %v425
        %v434 = vand.u32 2147483647, %v426
        %v435 = vand.u32 2147483647, %v427
        %v436 = vand.u32 2147483647, %v428
        %v437 = vand.u32 2147483647, %v429
        %v438 = vand.u32 2147483647, %v430
        %v439 = vand.u32 2147483647, %v431
        %v440 = vadd.f32 %v383, %v432
        %v441 = vadd.f32 %v384, %v433
        %v442 = vadd.f32 %v385, %v434
        %v443 = vadd.f32 %v386, %v435
        %v444 = vadd.f32 %v387, %v436
        %v445 = vadd.f32 %v388, %v437
        %v446 = vadd.f32 %v389, %v438
        %v447 = vadd.f32 %v390, %v439
        %448 = vset.pattern.permute.xlu0 2
        %449 = vperm.xlu0 %448, %v325
        %v450 = vpop.permute.xlu0 %449
        %452 = vset.pattern.permute.xlu0 2
        %453 = vperm.xlu0 %452, %v326
        %v454 = vpop.permute.xlu0 %453
        %456 = vset.pattern.permute.xlu0 2
        %457 = vperm.xlu0 %456, %v327
        %v458 = vpop.permute.xlu0 %457
        %460 = vset.pattern.permute.xlu0 2
        %461 = vperm.xlu0 %460, %v328
        %v462 = vpop.permute.xlu0 %461
        %464 = vset.pattern.permute.xlu0 2
        %465 = vperm.xlu0 %464, %v329
        %v466 = vpop.permute.xlu0 %465
        %468 = vset.pattern.permute.xlu0 2
        %469 = vperm.xlu0 %468, %v330
        %v470 = vpop.permute.xlu0 %469
        %472 = vset.pattern.permute.xlu0 2
        %473 = vperm.xlu0 %472, %v331
        %v474 = vpop.permute.xlu0 %473
        %476 = vset.pattern.permute.xlu0 2
        %477 = vperm.xlu0 %476, %v332
        %v478 = vpop.permute.xlu0 %477
        %v480 = vperm.slane %v333, 2
        %v481 = vsub.f32 %v450, %v480
        %v482 = vsub.f32 %v454, %v480
        %v483 = vsub.f32 %v458, %v480
        %v484 = vsub.f32 %v462, %v480
        %v485 = vsub.f32 %v466, %v480
        %v486 = vsub.f32 %v470, %v480
        %v487 = vsub.f32 %v474, %v480
        %v488 = vsub.f32 %v478, %v480
        %v489 = vand.u32 2147483647, %v481
        %v490 = vand.u32 2147483647, %v482
        %v491 = vand.u32 2147483647, %v483
        %v492 = vand.u32 2147483647, %v484
        %v493 = vand.u32 2147483647, %v485
        %v494 = vand.u32 2147483647, %v486
        %v495 = vand.u32 2147483647, %v487
        %v496 = vand.u32 2147483647, %v488
        %v497 = vadd.f32 %v440, %v489
        %v498 = vadd.f32 %v441, %v490
        %v499 = vadd.f32 %v442, %v491
        %v500 = vadd.f32 %v443, %v492
        %v501 = vadd.f32 %v444, %v493
        %v502 = vadd.f32 %v445, %v494
        %v503 = vadd.f32 %v446, %v495
        %v504 = vadd.f32 %v447, %v496
        %505 = vset.pattern.permute.xlu0 3
        %506 = vperm.xlu0 %505, %v325
        %v507 = vpop.permute.xlu0 %506
        %509 = vset.pattern.permute.xlu0 3
        %510 = vperm.xlu0 %509, %v326
        %v511 = vpop.permute.xlu0 %510
        %513 = vset.pattern.permute.xlu0 3
        %514 = vperm.xlu0 %513, %v327
        %v515 = vpop.permute.xlu0 %514
        %517 = vset.pattern.permute.xlu0 3
        %518 = vperm.xlu0 %517, %v328
        %v519 = vpop.permute.xlu0 %518
        %521 = vset.pattern.permute.xlu0 3
        %522 = vperm.xlu0 %521, %v329
        %v523 = vpop.permute.xlu0 %522
        %525 = vset.pattern.permute.xlu0 3
        %526 = vperm.xlu0 %525, %v330
        %v527 = vpop.permute.xlu0 %526
        %529 = vset.pattern.permute.xlu0 3
        %530 = vperm.xlu0 %529, %v331
        %v531 = vpop.permute.xlu0 %530
        %533 = vset.pattern.permute.xlu0 3
        %534 = vperm.xlu0 %533, %v332
        %v535 = vpop.permute.xlu0 %534
        %v537 = vperm.slane %v333, 3
        %v538 = vsub.f32 %v507, %v537
        %v539 = vsub.f32 %v511, %v537
        %v540 = vsub.f32 %v515, %v537
        %v541 = vsub.f32 %v519, %v537
        %v542 = vsub.f32 %v523, %v537
        %v543 = vsub.f32 %v527, %v537
        %v544 = vsub.f32 %v531, %v537
        %v545 = vsub.f32 %v535, %v537
        %v546 = vand.u32 2147483647, %v538
        %v547 = vand.u32 2147483647, %v539
        %v548 = vand.u32 2147483647, %v540
        %v549 = vand.u32 2147483647, %v541
        %v550 = vand.u32 2147483647, %v542
        %v551 = vand.u32 2147483647, %v543
        %v552 = vand.u32 2147483647, %v544
        %v553 = vand.u32 2147483647, %v545
        %v554 = vadd.f32 %v497, %v546
        %v555 = vadd.f32 %v498, %v547
        %v556 = vadd.f32 %v499, %v548
        %v557 = vadd.f32 %v500, %v549
        %v558 = vadd.f32 %v501, %v550
        %v559 = vadd.f32 %v502, %v551
        %v560 = vadd.f32 %v503, %v552
        %v561 = vadd.f32 %v504, %v553
        %v562 = vmul.f32 %v325, 0.5
        %v563 = vmul.f32 %v326, 0.5
        %v564 = vmul.f32 %v327, 0.5
        %v565 = vmul.f32 %v328, 0.5
        %v566 = vmul.f32 %v329, 0.5
        %v567 = vmul.f32 %v330, 0.5
        %v568 = vmul.f32 %v331, 0.5
        %v569 = vmul.f32 %v332, 0.5
        %578 = vrot.lane.b32.xlu0 %v562, 126
        %v579 = vpop.permute.xlu0 %578
        %580 = vrot.lane.b32.xlu0 %v563, 126
        %v581 = vpop.permute.xlu0 %580
        %582 = vrot.lane.b32.xlu0 %v564, 126
        %v583 = vpop.permute.xlu0 %582
        %584 = vrot.lane.b32.xlu0 %v565, 126
        %v585 = vpop.permute.xlu0 %584
        %586 = vrot.lane.b32.xlu0 %v566, 126
        %v587 = vpop.permute.xlu0 %586
        %588 = vrot.lane.b32.xlu0 %v567, 126
        %v589 = vpop.permute.xlu0 %588
        %590 = vrot.lane.b32.xlu0 %v568, 126
        %v591 = vpop.permute.xlu0 %590
        %592 = vrot.lane.b32.xlu0 %v569, 126
        %v593 = vpop.permute.xlu0 %592
        %v602 = vsub.f32 %v325, %v579
        %v603 = vsub.f32 %v326, %v581
        %v604 = vsub.f32 %v327, %v583
        %v605 = vsub.f32 %v328, %v585
        %v606 = vsub.f32 %v329, %v587
        %v607 = vsub.f32 %v330, %v589
        %v608 = vsub.f32 %v331, %v591
        %v609 = vsub.f32 %v332, %v593
        %v610 = vadd.f32 %v325, %v579
        %v611 = vadd.f32 %v326, %v581
        %v612 = vadd.f32 %v327, %v583
        %v613 = vadd.f32 %v328, %v585
        %v614 = vadd.f32 %v329, %v587
        %v615 = vadd.f32 %v330, %v589
        %v616 = vadd.f32 %v331, %v591
        %v617 = vadd.f32 %v332, %v593
        %v618 = vmul.f32 %v333, 0.5
        %v620 = vrot.slane %v618, 2
        %v622 = vsub.f32 %v333, %v620
        %v623 = vadd.f32 %v333, %v620
        %v624 = vsub.f32 %v610, %v602
        %v625 = vsub.f32 %v611, %v603
        %v626 = vsub.f32 %v612, %v604
        %v627 = vsub.f32 %v613, %v605
        %v628 = vsub.f32 %v614, %v606
        %v629 = vsub.f32 %v615, %v607
        %v630 = vsub.f32 %v616, %v608
        %v631 = vsub.f32 %v617, %v609
        %640 = vrot.lane.b32.xlu0 %v624, 127
        %v641 = vpop.permute.xlu0 %640
        %642 = vrot.lane.b32.xlu0 %v625, 127
        %v643 = vpop.permute.xlu0 %642
        %644 = vrot.lane.b32.xlu0 %v626, 127
        %v645 = vpop.permute.xlu0 %644
        %646 = vrot.lane.b32.xlu0 %v627, 127
        %v647 = vpop.permute.xlu0 %646
        %648 = vrot.lane.b32.xlu0 %v628, 127
        %v649 = vpop.permute.xlu0 %648
        %650 = vrot.lane.b32.xlu0 %v629, 127
        %v651 = vpop.permute.xlu0 %650
        %652 = vrot.lane.b32.xlu0 %v630, 127
        %v653 = vpop.permute.xlu0 %652
        %654 = vrot.lane.b32.xlu0 %v631, 127
        %v655 = vpop.permute.xlu0 %654
        %v664 = vmul.f32 %v624, %v641
        %v665 = vmul.f32 %v625, %v643
        %v666 = vmul.f32 %v626, %v645
        %v667 = vmul.f32 %v627, %v647
        %v668 = vmul.f32 %v628, %v649
        %v669 = vmul.f32 %v629, %v651
        %v670 = vmul.f32 %v630, %v653
        %v671 = vmul.f32 %v631, %v655
        %v672 = vsub.f32 %v623, %v622
        %v674 = vrot.slane %v672, 1
        %v676 = vmul.f32 %v672, %v674
        %678 = vset.pattern.permute.xlu0 0
        %679 = vperm.xlu0 %678, %v610
        %v680 = vpop.permute.xlu0 %679
        %683 = vset.pattern.permute.xlu0 0
        %684 = vperm.xlu0 %683, %v611
        %v685 = vpop.permute.xlu0 %684
        %688 = vset.pattern.permute.xlu0 0
        %689 = vperm.xlu0 %688, %v612
        %v690 = vpop.permute.xlu0 %689
        %693 = vset.pattern.permute.xlu0 0
        %694 = vperm.xlu0 %693, %v613
        %v695 = vpop.permute.xlu0 %694
        %698 = vset.pattern.permute.xlu0 0
        %699 = vperm.xlu0 %698, %v614
        %v700 = vpop.permute.xlu0 %699
        %703 = vset.pattern.permute.xlu0 0
        %704 = vperm.xlu0 %703, %v615
        %v705 = vpop.permute.xlu0 %704
        %708 = vset.pattern.permute.xlu0 0
        %709 = vperm.xlu0 %708, %v616
        %v710 = vpop.permute.xlu0 %709
        %713 = vset.pattern.permute.xlu0 0
        %714 = vperm.xlu0 %713, %v617
        %v715 = vpop.permute.xlu0 %714
        %v717 = vperm.slane %v623, 0
        %v718 = vmin.f32 %v680, %v717
        %v719 = vmin.f32 %v685, %v717
        %v720 = vmin.f32 %v690, %v717
        %v721 = vmin.f32 %v695, %v717
        %v722 = vmin.f32 %v700, %v717
        %v723 = vmin.f32 %v705, %v717
        %v724 = vmin.f32 %v710, %v717
        %v725 = vmin.f32 %v715, %v717
        %727 = vset.pattern.permute.xlu0 0
        %728 = vperm.xlu0 %727, %v602
        %v729 = vpop.permute.xlu0 %728
        %732 = vset.pattern.permute.xlu0 0
        %733 = vperm.xlu0 %732, %v603
        %v734 = vpop.permute.xlu0 %733
        %737 = vset.pattern.permute.xlu0 0
        %738 = vperm.xlu0 %737, %v604
        %v739 = vpop.permute.xlu0 %738
        %742 = vset.pattern.permute.xlu0 0
        %743 = vperm.xlu0 %742, %v605
        %v744 = vpop.permute.xlu0 %743
        %747 = vset.pattern.permute.xlu0 0
        %748 = vperm.xlu0 %747, %v606
        %v749 = vpop.permute.xlu0 %748
        %752 = vset.pattern.permute.xlu0 0
        %753 = vperm.xlu0 %752, %v607
        %v754 = vpop.permute.xlu0 %753
        %757 = vset.pattern.permute.xlu0 0
        %758 = vperm.xlu0 %757, %v608
        %v759 = vpop.permute.xlu0 %758
        %762 = vset.pattern.permute.xlu0 0
        %763 = vperm.xlu0 %762, %v609
        %v764 = vpop.permute.xlu0 %763
        %v766 = vperm.slane %v622, 0
        %v767 = vmax.f32 %v729, %v766
        %v768 = vmax.f32 %v734, %v766
        %v769 = vmax.f32 %v739, %v766
        %v770 = vmax.f32 %v744, %v766
        %v771 = vmax.f32 %v749, %v766
        %v772 = vmax.f32 %v754, %v766
        %v773 = vmax.f32 %v759, %v766
        %v774 = vmax.f32 %v764, %v766
        %v775 = vsub.f32 %v718, %v767
        %v776 = vsub.f32 %v719, %v768
        %v777 = vsub.f32 %v720, %v769
        %v778 = vsub.f32 %v721, %v770
        %v779 = vsub.f32 %v722, %v771
        %v780 = vsub.f32 %v723, %v772
        %v781 = vsub.f32 %v724, %v773
        %v782 = vsub.f32 %v725, %v774
        %v783 = vmax.f32 %v775, 0.0
        %v784 = vmax.f32 %v776, 0.0
        %v785 = vmax.f32 %v777, 0.0
        %v786 = vmax.f32 %v778, 0.0
        %v787 = vmax.f32 %v779, 0.0
        %v788 = vmax.f32 %v780, 0.0
        %v789 = vmax.f32 %v781, 0.0
        %v790 = vmax.f32 %v782, 0.0
        %791 = vset.pattern.permute.xlu0 1
        %792 = vperm.xlu0 %791, %v610
        %v793 = vpop.permute.xlu0 %792
        %795 = vset.pattern.permute.xlu0 1
        %796 = vperm.xlu0 %795, %v611
        %v797 = vpop.permute.xlu0 %796
        %799 = vset.pattern.permute.xlu0 1
        %800 = vperm.xlu0 %799, %v612
        %v801 = vpop.permute.xlu0 %800
        %803 = vset.pattern.permute.xlu0 1
        %804 = vperm.xlu0 %803, %v613
        %v805 = vpop.permute.xlu0 %804
        %807 = vset.pattern.permute.xlu0 1
        %808 = vperm.xlu0 %807, %v614
        %v809 = vpop.permute.xlu0 %808
        %811 = vset.pattern.permute.xlu0 1
        %812 = vperm.xlu0 %811, %v615
        %v813 = vpop.permute.xlu0 %812
        %815 = vset.pattern.permute.xlu0 1
        %816 = vperm.xlu0 %815, %v616
        %v817 = vpop.permute.xlu0 %816
        %819 = vset.pattern.permute.xlu0 1
        %820 = vperm.xlu0 %819, %v617
        %v821 = vpop.permute.xlu0 %820
        %v823 = vperm.slane %v623, 1
        %v824 = vmin.f32 %v793, %v823
        %v825 = vmin.f32 %v797, %v823
        %v826 = vmin.f32 %v801, %v823
        %v827 = vmin.f32 %v805, %v823
        %v828 = vmin.f32 %v809, %v823
        %v829 = vmin.f32 %v813, %v823
        %v830 = vmin.f32 %v817, %v823
        %v831 = vmin.f32 %v821, %v823
        %832 = vset.pattern.permute.xlu0 1
        %833 = vperm.xlu0 %832, %v602
        %v834 = vpop.permute.xlu0 %833
        %836 = vset.pattern.permute.xlu0 1
        %837 = vperm.xlu0 %836, %v603
        %v838 = vpop.permute.xlu0 %837
        %840 = vset.pattern.permute.xlu0 1
        %841 = vperm.xlu0 %840, %v604
        %v842 = vpop.permute.xlu0 %841
        %844 = vset.pattern.permute.xlu0 1
        %845 = vperm.xlu0 %844, %v605
        %v846 = vpop.permute.xlu0 %845
        %848 = vset.pattern.permute.xlu0 1
        %849 = vperm.xlu0 %848, %v606
        %v850 = vpop.permute.xlu0 %849
        %852 = vset.pattern.permute.xlu0 1
        %853 = vperm.xlu0 %852, %v607
        %v854 = vpop.permute.xlu0 %853
        %856 = vset.pattern.permute.xlu0 1
        %857 = vperm.xlu0 %856, %v608
        %v858 = vpop.permute.xlu0 %857
        %860 = vset.pattern.permute.xlu0 1
        %861 = vperm.xlu0 %860, %v609
        %v862 = vpop.permute.xlu0 %861
        %v864 = vperm.slane %v622, 1
        %v865 = vmax.f32 %v834, %v864
        %v866 = vmax.f32 %v838, %v864
        %v867 = vmax.f32 %v842, %v864
        %v868 = vmax.f32 %v846, %v864
        %v869 = vmax.f32 %v850, %v864
        %v870 = vmax.f32 %v854, %v864
        %v871 = vmax.f32 %v858, %v864
        %v872 = vmax.f32 %v862, %v864
        %v873 = vsub.f32 %v824, %v865
        %v874 = vsub.f32 %v825, %v866
        %v875 = vsub.f32 %v826, %v867
        %v876 = vsub.f32 %v827, %v868
        %v877 = vsub.f32 %v828, %v869
        %v878 = vsub.f32 %v829, %v870
        %v879 = vsub.f32 %v830, %v871
        %v880 = vsub.f32 %v831, %v872
        %v881 = vmax.f32 %v873, 0.0
        %v882 = vmax.f32 %v874, 0.0
        %v883 = vmax.f32 %v875, 0.0
        %v884 = vmax.f32 %v876, 0.0
        %v885 = vmax.f32 %v877, 0.0
        %v886 = vmax.f32 %v878, 0.0
        %v887 = vmax.f32 %v879, 0.0
        %v888 = vmax.f32 %v880, 0.0
        %v889 = vmul.f32 %v783, %v881
        %v890 = vmul.f32 %v784, %v882
        %v891 = vmul.f32 %v785, %v883
        %v892 = vmul.f32 %v786, %v884
        %v893 = vmul.f32 %v787, %v885
        %v894 = vmul.f32 %v788, %v886
        %v895 = vmul.f32 %v789, %v887
        %v896 = vmul.f32 %v790, %v888
        %898 = vset.pattern.permute.xlu0 0
        %899 = vperm.xlu0 %898, %v664
        %v900 = vpop.permute.xlu0 %899
        %903 = vset.pattern.permute.xlu0 0
        %904 = vperm.xlu0 %903, %v665
        %v905 = vpop.permute.xlu0 %904
        %908 = vset.pattern.permute.xlu0 0
        %909 = vperm.xlu0 %908, %v666
        %v910 = vpop.permute.xlu0 %909
        %913 = vset.pattern.permute.xlu0 0
        %914 = vperm.xlu0 %913, %v667
        %v915 = vpop.permute.xlu0 %914
        %918 = vset.pattern.permute.xlu0 0
        %919 = vperm.xlu0 %918, %v668
        %v920 = vpop.permute.xlu0 %919
        %923 = vset.pattern.permute.xlu0 0
        %924 = vperm.xlu0 %923, %v669
        %v925 = vpop.permute.xlu0 %924
        %928 = vset.pattern.permute.xlu0 0
        %929 = vperm.xlu0 %928, %v670
        %v930 = vpop.permute.xlu0 %929
        %933 = vset.pattern.permute.xlu0 0
        %934 = vperm.xlu0 %933, %v671
        %v935 = vpop.permute.xlu0 %934
        %v937 = vperm.slane %v676, 0
        %v938 = vadd.f32 %v900, %v937
        %v939 = vadd.f32 %v905, %v937
        %v940 = vadd.f32 %v910, %v937
        %v941 = vadd.f32 %v915, %v937
        %v942 = vadd.f32 %v920, %v937
        %v943 = vadd.f32 %v925, %v937
        %v944 = vadd.f32 %v930, %v937
        %v945 = vadd.f32 %v935, %v937
        %v946 = vsub.f32 %v938, %v889
        %v947 = vsub.f32 %v939, %v890
        %v948 = vsub.f32 %v940, %v891
        %v949 = vsub.f32 %v941, %v892
        %v950 = vsub.f32 %v942, %v893
        %v951 = vsub.f32 %v943, %v894
        %v952 = vsub.f32 %v944, %v895
        %v953 = vsub.f32 %v945, %v896
        %v954 = vmax.f32 %v946, 1e-12
        %v955 = vmax.f32 %v947, 1e-12
        %v956 = vmax.f32 %v948, 1e-12
        %v957 = vmax.f32 %v949, 1e-12
        %v958 = vmax.f32 %v950, 1e-12
        %v959 = vmax.f32 %v951, 1e-12
        %v960 = vmax.f32 %v952, 1e-12
        %v961 = vmax.f32 %v953, 1e-12
        %v962 = vrcp.pop %v954
        %v963 = vmul.f32 %v954, %v962
        %v964 = vsub.f32 1.0, %v963
        %v965 = vmul.f32 %v962, %v964
        %v966 = vadd.f32 %v962, %v965
        %vm967 = vweird.f32 %v954
        %vm968 = vweird.f32 %v962
        %vm969 = vmor %vm967, %vm968
        %v970 = vsel %vm969, %v962, %v966
        %v971 = vand.u32 2147483647, %v954
        %vm972 = vcmp.eq.f32.partialorder %v971, 8.507059e+37
        %v973 = vand.u32 %v954, 2147483648
        %v974 = vor.u32 1.1754944e-38, %v973
        %v975 = vsel %vm972, %v974, %v970
        %v976 = vmul.f32 %v889, %v975
        %v977 = vrcp.pop %v955
        %v978 = vmul.f32 %v955, %v977
        %v979 = vsub.f32 1.0, %v978
        %v980 = vmul.f32 %v977, %v979
        %v981 = vadd.f32 %v977, %v980
        %vm982 = vweird.f32 %v955
        %vm983 = vweird.f32 %v977
        %vm984 = vmor %vm982, %vm983
        %v985 = vsel %vm984, %v977, %v981
        %v986 = vand.u32 2147483647, %v955
        %vm987 = vcmp.eq.f32.partialorder %v986, 8.507059e+37
        %v988 = vand.u32 %v955, 2147483648
        %v989 = vor.u32 1.1754944e-38, %v988
        %v990 = vsel %vm987, %v989, %v985
        %v991 = vmul.f32 %v890, %v990
        %v992 = vrcp.pop %v956
        %v993 = vmul.f32 %v956, %v992
        %v994 = vsub.f32 1.0, %v993
        %v995 = vmul.f32 %v992, %v994
        %v996 = vadd.f32 %v992, %v995
        %vm997 = vweird.f32 %v956
        %vm998 = vweird.f32 %v992
        %vm999 = vmor %vm997, %vm998
        %v1000 = vsel %vm999, %v992, %v996
        %v1001 = vand.u32 2147483647, %v956
        %vm1002 = vcmp.eq.f32.partialorder %v1001, 8.507059e+37
        %v1003 = vand.u32 %v956, 2147483648
        %v1004 = vor.u32 1.1754944e-38, %v1003
        %v1005 = vsel %vm1002, %v1004, %v1000
        %v1006 = vmul.f32 %v891, %v1005
        %v1007 = vrcp.pop %v957
        %v1008 = vmul.f32 %v957, %v1007
        %v1009 = vsub.f32 1.0, %v1008
        %v1010 = vmul.f32 %v1007, %v1009
        %v1011 = vadd.f32 %v1007, %v1010
        %vm1012 = vweird.f32 %v957
        %vm1013 = vweird.f32 %v1007
        %vm1014 = vmor %vm1012, %vm1013
        %v1015 = vsel %vm1014, %v1007, %v1011
        %v1016 = vand.u32 2147483647, %v957
        %vm1017 = vcmp.eq.f32.partialorder %v1016, 8.507059e+37
        %v1018 = vand.u32 %v957, 2147483648
        %v1019 = vor.u32 1.1754944e-38, %v1018
        %v1020 = vsel %vm1017, %v1019, %v1015
        %v1021 = vmul.f32 %v892, %v1020
        %v1022 = vrcp.pop %v958
        %v1023 = vmul.f32 %v958, %v1022
        %v1024 = vsub.f32 1.0, %v1023
        %v1025 = vmul.f32 %v1022, %v1024
        %v1026 = vadd.f32 %v1022, %v1025
        %vm1027 = vweird.f32 %v958
        %vm1028 = vweird.f32 %v1022
        %vm1029 = vmor %vm1027, %vm1028
        %v1030 = vsel %vm1029, %v1022, %v1026
        %v1031 = vand.u32 2147483647, %v958
        %vm1032 = vcmp.eq.f32.partialorder %v1031, 8.507059e+37
        %v1033 = vand.u32 %v958, 2147483648
        %v1034 = vor.u32 1.1754944e-38, %v1033
        %v1035 = vsel %vm1032, %v1034, %v1030
        %v1036 = vmul.f32 %v893, %v1035
        %v1037 = vrcp.pop %v959
        %v1038 = vmul.f32 %v959, %v1037
        %v1039 = vsub.f32 1.0, %v1038
        %v1040 = vmul.f32 %v1037, %v1039
        %v1041 = vadd.f32 %v1037, %v1040
        %vm1042 = vweird.f32 %v959
        %vm1043 = vweird.f32 %v1037
        %vm1044 = vmor %vm1042, %vm1043
        %v1045 = vsel %vm1044, %v1037, %v1041
        %v1046 = vand.u32 2147483647, %v959
        %vm1047 = vcmp.eq.f32.partialorder %v1046, 8.507059e+37
        %v1048 = vand.u32 %v959, 2147483648
        %v1049 = vor.u32 1.1754944e-38, %v1048
        %v1050 = vsel %vm1047, %v1049, %v1045
        %v1051 = vmul.f32 %v894, %v1050
        %v1052 = vrcp.pop %v960
        %v1053 = vmul.f32 %v960, %v1052
        %v1054 = vsub.f32 1.0, %v1053
        %v1055 = vmul.f32 %v1052, %v1054
        %v1056 = vadd.f32 %v1052, %v1055
        %vm1057 = vweird.f32 %v960
        %vm1058 = vweird.f32 %v1052
        %vm1059 = vmor %vm1057, %vm1058
        %v1060 = vsel %vm1059, %v1052, %v1056
        %v1061 = vand.u32 2147483647, %v960
        %vm1062 = vcmp.eq.f32.partialorder %v1061, 8.507059e+37
        %v1063 = vand.u32 %v960, 2147483648
        %v1064 = vor.u32 1.1754944e-38, %v1063
        %v1065 = vsel %vm1062, %v1064, %v1060
        %v1066 = vmul.f32 %v895, %v1065
        %v1067 = vrcp.pop %v961
        %v1068 = vmul.f32 %v961, %v1067
        %v1069 = vsub.f32 1.0, %v1068
        %v1070 = vmul.f32 %v1067, %v1069
        %v1071 = vadd.f32 %v1067, %v1070
        %vm1072 = vweird.f32 %v961
        %vm1073 = vweird.f32 %v1067
        %vm1074 = vmor %vm1072, %vm1073
        %v1075 = vsel %vm1074, %v1067, %v1071
        %v1076 = vand.u32 2147483647, %v961
        %vm1077 = vcmp.eq.f32.partialorder %v1076, 8.507059e+37
        %v1078 = vand.u32 %v961, 2147483648
        %v1079 = vor.u32 1.1754944e-38, %v1078
        %v1080 = vsel %vm1077, %v1079, %v1075
        %v1081 = vmul.f32 %v896, %v1080
        %v1082 = vmax.f32 %v680, %v717
        %v1083 = vmax.f32 %v685, %v717
        %v1084 = vmax.f32 %v690, %v717
        %v1085 = vmax.f32 %v695, %v717
        %v1086 = vmax.f32 %v700, %v717
        %v1087 = vmax.f32 %v705, %v717
        %v1088 = vmax.f32 %v710, %v717
        %v1089 = vmax.f32 %v715, %v717
        %v1090 = vmin.f32 %v729, %v766
        %v1091 = vmin.f32 %v734, %v766
        %v1092 = vmin.f32 %v739, %v766
        %v1093 = vmin.f32 %v744, %v766
        %v1094 = vmin.f32 %v749, %v766
        %v1095 = vmin.f32 %v754, %v766
        %v1096 = vmin.f32 %v759, %v766
        %v1097 = vmin.f32 %v764, %v766
        %v1098 = vsub.f32 %v1082, %v1090
        %v1099 = vsub.f32 %v1083, %v1091
        %v1100 = vsub.f32 %v1084, %v1092
        %v1101 = vsub.f32 %v1085, %v1093
        %v1102 = vsub.f32 %v1086, %v1094
        %v1103 = vsub.f32 %v1087, %v1095
        %v1104 = vsub.f32 %v1088, %v1096
        %v1105 = vsub.f32 %v1089, %v1097
        %v1106 = vmax.f32 %v1098, 0.0
        %v1107 = vmax.f32 %v1099, 0.0
        %v1108 = vmax.f32 %v1100, 0.0
        %v1109 = vmax.f32 %v1101, 0.0
        %v1110 = vmax.f32 %v1102, 0.0
        %v1111 = vmax.f32 %v1103, 0.0
        %v1112 = vmax.f32 %v1104, 0.0
        %v1113 = vmax.f32 %v1105, 0.0
        %v1114 = vmax.f32 %v793, %v823
        %v1115 = vmax.f32 %v797, %v823
        %v1116 = vmax.f32 %v801, %v823
        %v1117 = vmax.f32 %v805, %v823
        %v1118 = vmax.f32 %v809, %v823
        %v1119 = vmax.f32 %v813, %v823
        %v1120 = vmax.f32 %v817, %v823
        %v1121 = vmax.f32 %v821, %v823
        %v1122 = vmin.f32 %v834, %v864
        %v1123 = vmin.f32 %v838, %v864
        %v1124 = vmin.f32 %v842, %v864
        %v1125 = vmin.f32 %v846, %v864
        %v1126 = vmin.f32 %v850, %v864
        %v1127 = vmin.f32 %v854, %v864
        %v1128 = vmin.f32 %v858, %v864
        %v1129 = vmin.f32 %v862, %v864
        %v1130 = vsub.f32 %v1114, %v1122
        %v1131 = vsub.f32 %v1115, %v1123
        %v1132 = vsub.f32 %v1116, %v1124
        %v1133 = vsub.f32 %v1117, %v1125
        %v1134 = vsub.f32 %v1118, %v1126
        %v1135 = vsub.f32 %v1119, %v1127
        %v1136 = vsub.f32 %v1120, %v1128
        %v1137 = vsub.f32 %v1121, %v1129
        %v1138 = vmax.f32 %v1130, 0.0
        %v1139 = vmax.f32 %v1131, 0.0
        %v1140 = vmax.f32 %v1132, 0.0
        %v1141 = vmax.f32 %v1133, 0.0
        %v1142 = vmax.f32 %v1134, 0.0
        %v1143 = vmax.f32 %v1135, 0.0
        %v1144 = vmax.f32 %v1136, 0.0
        %v1145 = vmax.f32 %v1137, 0.0
        %v1146 = vmul.f32 %v1106, %v1138
        %v1147 = vmul.f32 %v1107, %v1139
        %v1148 = vmul.f32 %v1108, %v1140
        %v1149 = vmul.f32 %v1109, %v1141
        %v1150 = vmul.f32 %v1110, %v1142
        %v1151 = vmul.f32 %v1111, %v1143
        %v1152 = vmul.f32 %v1112, %v1144
        %v1153 = vmul.f32 %v1113, %v1145
        %v1154 = vmax.f32 %v1146, 1e-12
        %v1155 = vmax.f32 %v1147, 1e-12
        %v1156 = vmax.f32 %v1148, 1e-12
        %v1157 = vmax.f32 %v1149, 1e-12
        %v1158 = vmax.f32 %v1150, 1e-12
        %v1159 = vmax.f32 %v1151, 1e-12
        %v1160 = vmax.f32 %v1152, 1e-12
        %v1161 = vmax.f32 %v1153, 1e-12
        %v1162 = vsub.f32 %v1154, %v954
        %v1163 = vsub.f32 %v1155, %v955
        %v1164 = vsub.f32 %v1156, %v956
        %v1165 = vsub.f32 %v1157, %v957
        %v1166 = vsub.f32 %v1158, %v958
        %v1167 = vsub.f32 %v1159, %v959
        %v1168 = vsub.f32 %v1160, %v960
        %v1169 = vsub.f32 %v1161, %v961
        %v1170 = vrcp.pop %v1154
        %v1171 = vmul.f32 %v1154, %v1170
        %v1172 = vsub.f32 1.0, %v1171
        %v1173 = vmul.f32 %v1170, %v1172
        %v1174 = vadd.f32 %v1170, %v1173
        %vm1175 = vweird.f32 %v1154
        %vm1176 = vweird.f32 %v1170
        %vm1177 = vmor %vm1175, %vm1176
        %v1178 = vsel %vm1177, %v1170, %v1174
        %v1179 = vand.u32 2147483647, %v1154
        %vm1180 = vcmp.eq.f32.partialorder %v1179, 8.507059e+37
        %v1181 = vand.u32 %v1154, 2147483648
        %v1182 = vor.u32 1.1754944e-38, %v1181
        %v1183 = vsel %vm1180, %v1182, %v1178
        %v1184 = vmul.f32 %v1162, %v1183
        %v1185 = vrcp.pop %v1155
        %v1186 = vmul.f32 %v1155, %v1185
        %v1187 = vsub.f32 1.0, %v1186
        %v1188 = vmul.f32 %v1185, %v1187
        %v1189 = vadd.f32 %v1185, %v1188
        %vm1190 = vweird.f32 %v1155
        %vm1191 = vweird.f32 %v1185
        %vm1192 = vmor %vm1190, %vm1191
        %v1193 = vsel %vm1192, %v1185, %v1189
        %v1194 = vand.u32 2147483647, %v1155
        %vm1195 = vcmp.eq.f32.partialorder %v1194, 8.507059e+37
        %v1196 = vand.u32 %v1155, 2147483648
        %v1197 = vor.u32 1.1754944e-38, %v1196
        %v1198 = vsel %vm1195, %v1197, %v1193
        %v1199 = vmul.f32 %v1163, %v1198
        %v1200 = vrcp.pop %v1156
        %v1201 = vmul.f32 %v1156, %v1200
        %v1202 = vsub.f32 1.0, %v1201
        %v1203 = vmul.f32 %v1200, %v1202
        %v1204 = vadd.f32 %v1200, %v1203
        %vm1205 = vweird.f32 %v1156
        %vm1206 = vweird.f32 %v1200
        %vm1207 = vmor %vm1205, %vm1206
        %v1208 = vsel %vm1207, %v1200, %v1204
        %v1209 = vand.u32 2147483647, %v1156
        %vm1210 = vcmp.eq.f32.partialorder %v1209, 8.507059e+37
        %v1211 = vand.u32 %v1156, 2147483648
        %v1212 = vor.u32 1.1754944e-38, %v1211
        %v1213 = vsel %vm1210, %v1212, %v1208
        %v1214 = vmul.f32 %v1164, %v1213
        %v1215 = vrcp.pop %v1157
        %v1216 = vmul.f32 %v1157, %v1215
        %v1217 = vsub.f32 1.0, %v1216
        %v1218 = vmul.f32 %v1215, %v1217
        %v1219 = vadd.f32 %v1215, %v1218
        %vm1220 = vweird.f32 %v1157
        %vm1221 = vweird.f32 %v1215
        %vm1222 = vmor %vm1220, %vm1221
        %v1223 = vsel %vm1222, %v1215, %v1219
        %v1224 = vand.u32 2147483647, %v1157
        %vm1225 = vcmp.eq.f32.partialorder %v1224, 8.507059e+37
        %v1226 = vand.u32 %v1157, 2147483648
        %v1227 = vor.u32 1.1754944e-38, %v1226
        %v1228 = vsel %vm1225, %v1227, %v1223
        %v1229 = vmul.f32 %v1165, %v1228
        %v1230 = vrcp.pop %v1158
        %v1231 = vmul.f32 %v1158, %v1230
        %v1232 = vsub.f32 1.0, %v1231
        %v1233 = vmul.f32 %v1230, %v1232
        %v1234 = vadd.f32 %v1230, %v1233
        %vm1235 = vweird.f32 %v1158
        %vm1236 = vweird.f32 %v1230
        %vm1237 = vmor %vm1235, %vm1236
        %v1238 = vsel %vm1237, %v1230, %v1234
        %v1239 = vand.u32 2147483647, %v1158
        %vm1240 = vcmp.eq.f32.partialorder %v1239, 8.507059e+37
        %v1241 = vand.u32 %v1158, 2147483648
        %v1242 = vor.u32 1.1754944e-38, %v1241
        %v1243 = vsel %vm1240, %v1242, %v1238
        %v1244 = vmul.f32 %v1166, %v1243
        %v1245 = vrcp.pop %v1159
        %v1246 = vmul.f32 %v1159, %v1245
        %v1247 = vsub.f32 1.0, %v1246
        %v1248 = vmul.f32 %v1245, %v1247
        %v1249 = vadd.f32 %v1245, %v1248
        %vm1250 = vweird.f32 %v1159
        %vm1251 = vweird.f32 %v1245
        %vm1252 = vmor %vm1250, %vm1251
        %v1253 = vsel %vm1252, %v1245, %v1249
        %v1254 = vand.u32 2147483647, %v1159
        %vm1255 = vcmp.eq.f32.partialorder %v1254, 8.507059e+37
        %v1256 = vand.u32 %v1159, 2147483648
        %v1257 = vor.u32 1.1754944e-38, %v1256
        %v1258 = vsel %vm1255, %v1257, %v1253
        %v1259 = vmul.f32 %v1167, %v1258
        %v1260 = vrcp.pop %v1160
        %v1261 = vmul.f32 %v1160, %v1260
        %v1262 = vsub.f32 1.0, %v1261
        %v1263 = vmul.f32 %v1260, %v1262
        %v1264 = vadd.f32 %v1260, %v1263
        %vm1265 = vweird.f32 %v1160
        %vm1266 = vweird.f32 %v1260
        %vm1267 = vmor %vm1265, %vm1266
        %v1268 = vsel %vm1267, %v1260, %v1264
        %v1269 = vand.u32 2147483647, %v1160
        %vm1270 = vcmp.eq.f32.partialorder %v1269, 8.507059e+37
        %v1271 = vand.u32 %v1160, 2147483648
        %v1272 = vor.u32 1.1754944e-38, %v1271
        %v1273 = vsel %vm1270, %v1272, %v1268
        %v1274 = vmul.f32 %v1168, %v1273
        %v1275 = vrcp.pop %v1161
        %v1276 = vmul.f32 %v1161, %v1275
        %v1277 = vsub.f32 1.0, %v1276
        %v1278 = vmul.f32 %v1275, %v1277
        %v1279 = vadd.f32 %v1275, %v1278
        %vm1280 = vweird.f32 %v1161
        %vm1281 = vweird.f32 %v1275
        %vm1282 = vmor %vm1280, %vm1281
        %v1283 = vsel %vm1282, %v1275, %v1279
        %v1284 = vand.u32 2147483647, %v1161
        %vm1285 = vcmp.eq.f32.partialorder %v1284, 8.507059e+37
        %v1286 = vand.u32 %v1161, 2147483648
        %v1287 = vor.u32 1.1754944e-38, %v1286
        %v1288 = vsel %vm1285, %v1287, %v1283
        %v1289 = vmul.f32 %v1169, %v1288
        %v1290 = vsub.f32 %v976, %v1184
        %v1291 = vsub.f32 %v991, %v1199
        %v1292 = vsub.f32 %v1006, %v1214
        %v1293 = vsub.f32 %v1021, %v1229
        %v1294 = vsub.f32 %v1036, %v1244
        %v1295 = vsub.f32 %v1051, %v1259
        %v1296 = vsub.f32 %v1066, %v1274
        %v1297 = vsub.f32 %v1081, %v1289
        %v1298 = vsub.f32 0.0, %v1290
        %v1299 = vsub.f32 0.0, %v1291
        %v1300 = vsub.f32 0.0, %v1292
        %v1301 = vsub.f32 0.0, %v1293
        %v1302 = vsub.f32 0.0, %v1294
        %v1303 = vsub.f32 0.0, %v1295
        %v1304 = vsub.f32 0.0, %v1296
        %v1305 = vsub.f32 0.0, %v1297
        %v1306 = vld [vmem:[%s288] sm:$0xf]
        %v1307 = vld [vmem:[%s288 + $0x4] sm:$0xf]
        %v1308 = vld [vmem:[%s288 + $0x8] sm:$0xf]
        %v1309 = vld [vmem:[%s288 + $0xc] sm:$0xf]
        %v1310 = vld [vmem:[%s288 + $0x10] sm:$0xf]
        %v1311 = vld [vmem:[%s288 + $0x14] sm:$0xf]
        %v1312 = vld [vmem:[%s288 + $0x18] sm:$0xf]
        %v1313 = vld [vmem:[%s288 + $0x1c] sm:$0xf]
        %v1314 = vld [vmem:[%s3] sm:$0xf]
        %v1315 = vld [vmem:[%s3 + $0x4] sm:$0xf]
        %v1316 = vld [vmem:[%s3 + $0x8] sm:$0xf]
        %v1317 = vld [vmem:[%s3 + $0xc] sm:$0xf]
        %v1318 = vld [vmem:[%s3 + $0x10] sm:$0xf]
        %v1319 = vld [vmem:[%s3 + $0x14] sm:$0xf]
        %v1320 = vld [vmem:[%s3 + $0x18] sm:$0xf]
        %v1321 = vld [vmem:[%s3 + $0x1c] sm:$0xf]
        %v1322 = vld [vmem:[%s3 + $0x20] sm:$0xf]
        %v1323 = vld [vmem:[%s3 + $0x24] sm:$0xf]
        %v1324 = vld [vmem:[%s3 + $0x28] sm:$0xf]
        %v1325 = vld [vmem:[%s3 + $0x2c] sm:$0xf]
        %v1334 = vunpack.c.l.b16 %v1306
        %v1335 = vunpack.c.l.b16 %v1307
        %v1336 = vunpack.c.l.b16 %v1308
        %v1337 = vunpack.c.l.b16 %v1309
        %v1338 = vunpack.c.l.b16 %v1310
        %v1339 = vunpack.c.l.b16 %v1311
        %v1340 = vunpack.c.l.b16 %v1312
        %v1341 = vunpack.c.l.b16 %v1313
        %v1342 = vpack.c.b16 %v1335, %v1334
        %v1343 = vpack.c.b16 %v1337, %v1336
        %v1344 = vpack.c.b16 %v1339, %v1338
        %v1345 = vpack.c.b16 %v1341, %v1340
        %v1358 = vunpack.c.l.b16 %v1314
        %v1359 = vunpack.c.l.b16 %v1315
        %v1360 = vunpack.c.l.b16 %v1316
        %v1361 = vunpack.c.l.b16 %v1317
        %v1362 = vunpack.c.l.b16 %v1318
        %v1363 = vunpack.c.l.b16 %v1319
        %v1364 = vunpack.c.l.b16 %v1320
        %v1365 = vunpack.c.l.b16 %v1321
        %v1366 = vunpack.c.l.b16 %v1322
        %v1367 = vunpack.c.l.b16 %v1323
        %v1368 = vunpack.c.l.b16 %v1324
        %v1369 = vunpack.c.l.b16 %v1325
        %v1370 = vpack.c.b16 %v1359, %v1358
        %v1371 = vpack.c.b16 %v1361, %v1360
        %v1372 = vpack.c.b16 %v1363, %v1362
        %v1373 = vpack.c.b16 %v1365, %v1364
        %v1374 = vpack.c.b16 %v1367, %v1366
        %v1375 = vpack.c.b16 %v1369, %v1368
        %vm1382 = vcmask 785408
        %v1384 = vsel %vm1382, %v1342, 0
        %v1387 = vsel %vm1382, %v1343, 0
        %v1390 = vsel %vm1382, %v1344, 0
        %v1393 = vsel %vm1382, %v1345, 0
        %1395 = vmatpush.bf16.msra.mxu0 0
        %1396 = vmatpush.bf16.msra.mxu0 0
        %1397 = vmatpush.bf16.msra.mxu0 %v1375
        %1398 = vmatpush.bf16.msra.mxu0 %v1374
        %1399 = vmatpush.bf16.msra.mxu0 %v1373
        %1400 = vmatpush.bf16.msra.mxu0 %v1372
        %1401 = vmatpush.bf16.msra.mxu0 %v1371
        %1402 = vmatpush.bf16.msra.mxu0 %v1370
        %1403 = vmatmul.bf16.gmra.mxu0 %v1384
        %v1404 = vpop.f32.mrf.mxu0
        %v1405 = vadd.f32 0.0, %v1404
        %v1406 = vpop.f32.mrf.mxu0
        %v1407 = vadd.f32 0.0, %v1406
        %1408 = vmatmul.bf16.gmra.mxu0 %v1387
        %v1409 = vpop.f32.mrf.mxu0
        %v1410 = vadd.f32 0.0, %v1409
        %v1411 = vpop.f32.mrf.mxu0
        %v1412 = vadd.f32 0.0, %v1411
        %1413 = vmatmul.bf16.gmra.mxu0 %v1390
        %v1414 = vpop.f32.mrf.mxu0
        %v1415 = vadd.f32 0.0, %v1414
        %v1416 = vpop.f32.mrf.mxu0
        %v1417 = vadd.f32 0.0, %v1416
        %1418 = vmatmul.bf16.gmra.mxu0 %v1393
        %v1419 = vpop.f32.mrf.mxu0
        %v1420 = vadd.f32 0.0, %v1419
        %v1421 = vpop.f32.mrf.mxu0
        %v1422 = vadd.f32 0.0, %v1421
        %1423 = vdwg.mxu0
        %v1424 = vsub.f32 0.0, %v1405
        %v1425 = vsub.f32 0.0, %v1407
        %v1426 = vsub.f32 0.0, %v1410
        %v1427 = vsub.f32 0.0, %v1412
        %v1428 = vsub.f32 0.0, %v1415
        %v1429 = vsub.f32 0.0, %v1417
        %v1430 = vsub.f32 0.0, %v1420
        %v1431 = vsub.f32 0.0, %v1422
        %v1432 = vmul.f32 %v1424, 1.442695
        %v1433 = vpow.pop %v1432
        %v1434 = vmul.f32 %v1425, 1.442695
        %v1435 = vpow.pop %v1434
        %v1436 = vmul.f32 %v1426, 1.442695
        %v1437 = vpow.pop %v1436
        %v1438 = vmul.f32 %v1427, 1.442695
        %v1439 = vpow.pop %v1438
        %v1440 = vmul.f32 %v1428, 1.442695
        %v1441 = vpow.pop %v1440
        %v1442 = vmul.f32 %v1429, 1.442695
        %v1443 = vpow.pop %v1442
        %v1444 = vmul.f32 %v1430, 1.442695
        %v1445 = vpow.pop %v1444
        %v1446 = vmul.f32 %v1431, 1.442695
        %v1447 = vpow.pop %v1446
        %v1448 = vadd.f32 %v1433, 1.0
        %v1449 = vadd.f32 %v1435, 1.0
        %v1450 = vadd.f32 %v1437, 1.0
        %v1451 = vadd.f32 %v1439, 1.0
        %v1452 = vadd.f32 %v1441, 1.0
        %v1453 = vadd.f32 %v1443, 1.0
        %v1454 = vadd.f32 %v1445, 1.0
        %v1455 = vadd.f32 %v1447, 1.0
        %v1456 = vrcp.pop %v1448
        %v1457 = vmul.f32 %v1448, %v1456
        %v1458 = vsub.f32 1.0, %v1457
        %v1459 = vmul.f32 %v1456, %v1458
        %v1460 = vadd.f32 %v1456, %v1459
        %vm1461 = vweird.f32 %v1448
        %vm1462 = vweird.f32 %v1456
        %vm1463 = vmor %vm1461, %vm1462
        %v1464 = vsel %vm1463, %v1456, %v1460
        %v1465 = vand.u32 2147483647, %v1448
        %vm1466 = vcmp.eq.f32.partialorder %v1465, 8.507059e+37
        %v1467 = vand.u32 %v1448, 2147483648
        %v1468 = vor.u32 1.1754944e-38, %v1467
        %v1469 = vsel %vm1466, %v1468, %v1464
        %v1470 = vmul.f32 1.0, %v1469
        %v1471 = vrcp.pop %v1449
        %v1472 = vmul.f32 %v1449, %v1471
        %v1473 = vsub.f32 1.0, %v1472
        %v1474 = vmul.f32 %v1471, %v1473
        %v1475 = vadd.f32 %v1471, %v1474
        %vm1476 = vweird.f32 %v1449
        %vm1477 = vweird.f32 %v1471
        %vm1478 = vmor %vm1476, %vm1477
        %v1479 = vsel %vm1478, %v1471, %v1475
        %v1480 = vand.u32 2147483647, %v1449
        %vm1481 = vcmp.eq.f32.partialorder %v1480, 8.507059e+37
        %v1482 = vand.u32 %v1449, 2147483648
        %v1483 = vor.u32 1.1754944e-38, %v1482
        %v1484 = vsel %vm1481, %v1483, %v1479
        %v1485 = vmul.f32 1.0, %v1484
        %v1486 = vrcp.pop %v1450
        %v1487 = vmul.f32 %v1450, %v1486
        %v1488 = vsub.f32 1.0, %v1487
        %v1489 = vmul.f32 %v1486, %v1488
        %v1490 = vadd.f32 %v1486, %v1489
        %vm1491 = vweird.f32 %v1450
        %vm1492 = vweird.f32 %v1486
        %vm1493 = vmor %vm1491, %vm1492
        %v1494 = vsel %vm1493, %v1486, %v1490
        %v1495 = vand.u32 2147483647, %v1450
        %vm1496 = vcmp.eq.f32.partialorder %v1495, 8.507059e+37
        %v1497 = vand.u32 %v1450, 2147483648
        %v1498 = vor.u32 1.1754944e-38, %v1497
        %v1499 = vsel %vm1496, %v1498, %v1494
        %v1500 = vmul.f32 1.0, %v1499
        %v1501 = vrcp.pop %v1451
        %v1502 = vmul.f32 %v1451, %v1501
        %v1503 = vsub.f32 1.0, %v1502
        %v1504 = vmul.f32 %v1501, %v1503
        %v1505 = vadd.f32 %v1501, %v1504
        %vm1506 = vweird.f32 %v1451
        %vm1507 = vweird.f32 %v1501
        %vm1508 = vmor %vm1506, %vm1507
        %v1509 = vsel %vm1508, %v1501, %v1505
        %v1510 = vand.u32 2147483647, %v1451
        %vm1511 = vcmp.eq.f32.partialorder %v1510, 8.507059e+37
        %v1512 = vand.u32 %v1451, 2147483648
        %v1513 = vor.u32 1.1754944e-38, %v1512
        %v1514 = vsel %vm1511, %v1513, %v1509
        %v1515 = vmul.f32 1.0, %v1514
        %v1516 = vrcp.pop %v1452
        %v1517 = vmul.f32 %v1452, %v1516
        %v1518 = vsub.f32 1.0, %v1517
        %v1519 = vmul.f32 %v1516, %v1518
        %v1520 = vadd.f32 %v1516, %v1519
        %vm1521 = vweird.f32 %v1452
        %vm1522 = vweird.f32 %v1516
        %vm1523 = vmor %vm1521, %vm1522
        %v1524 = vsel %vm1523, %v1516, %v1520
        %v1525 = vand.u32 2147483647, %v1452
        %vm1526 = vcmp.eq.f32.partialorder %v1525, 8.507059e+37
        %v1527 = vand.u32 %v1452, 2147483648
        %v1528 = vor.u32 1.1754944e-38, %v1527
        %v1529 = vsel %vm1526, %v1528, %v1524
        %v1530 = vmul.f32 1.0, %v1529
        %v1531 = vrcp.pop %v1453
        %v1532 = vmul.f32 %v1453, %v1531
        %v1533 = vsub.f32 1.0, %v1532
        %v1534 = vmul.f32 %v1531, %v1533
        %v1535 = vadd.f32 %v1531, %v1534
        %vm1536 = vweird.f32 %v1453
        %vm1537 = vweird.f32 %v1531
        %vm1538 = vmor %vm1536, %vm1537
        %v1539 = vsel %vm1538, %v1531, %v1535
        %v1540 = vand.u32 2147483647, %v1453
        %vm1541 = vcmp.eq.f32.partialorder %v1540, 8.507059e+37
        %v1542 = vand.u32 %v1453, 2147483648
        %v1543 = vor.u32 1.1754944e-38, %v1542
        %v1544 = vsel %vm1541, %v1543, %v1539
        %v1545 = vmul.f32 1.0, %v1544
        %v1546 = vrcp.pop %v1454
        %v1547 = vmul.f32 %v1454, %v1546
        %v1548 = vsub.f32 1.0, %v1547
        %v1549 = vmul.f32 %v1546, %v1548
        %v1550 = vadd.f32 %v1546, %v1549
        %vm1551 = vweird.f32 %v1454
        %vm1552 = vweird.f32 %v1546
        %vm1553 = vmor %vm1551, %vm1552
        %v1554 = vsel %vm1553, %v1546, %v1550
        %v1555 = vand.u32 2147483647, %v1454
        %vm1556 = vcmp.eq.f32.partialorder %v1555, 8.507059e+37
        %v1557 = vand.u32 %v1454, 2147483648
        %v1558 = vor.u32 1.1754944e-38, %v1557
        %v1559 = vsel %vm1556, %v1558, %v1554
        %v1560 = vmul.f32 1.0, %v1559
        %v1561 = vrcp.pop %v1455
        %v1562 = vmul.f32 %v1455, %v1561
        %v1563 = vsub.f32 1.0, %v1562
        %v1564 = vmul.f32 %v1561, %v1563
        %v1565 = vadd.f32 %v1561, %v1564
        %vm1566 = vweird.f32 %v1455
        %vm1567 = vweird.f32 %v1561
        %vm1568 = vmor %vm1566, %vm1567
        %v1569 = vsel %vm1568, %v1561, %v1565
        %v1570 = vand.u32 2147483647, %v1455
        %vm1571 = vcmp.eq.f32.partialorder %v1570, 8.507059e+37
        %v1572 = vand.u32 %v1455, 2147483648
        %v1573 = vor.u32 1.1754944e-38, %v1572
        %v1574 = vsel %vm1571, %v1573, %v1569
        %v1575 = vmul.f32 1.0, %v1574
        %v1576 = vlog2.pop %v1448
        %v1577 = vmul.f32 %v1576, 0.6931472
        %v1578 = vlog2.pop %v1449
        %v1579 = vmul.f32 %v1578, 0.6931472
        %v1580 = vlog2.pop %v1450
        %v1581 = vmul.f32 %v1580, 0.6931472
        %v1582 = vlog2.pop %v1451
        %v1583 = vmul.f32 %v1582, 0.6931472
        %v1584 = vlog2.pop %v1452
        %v1585 = vmul.f32 %v1584, 0.6931472
        %v1586 = vlog2.pop %v1453
        %v1587 = vmul.f32 %v1586, 0.6931472
        %v1588 = vlog2.pop %v1454
        %v1589 = vmul.f32 %v1588, 0.6931472
        %v1590 = vlog2.pop %v1455
        %v1591 = vmul.f32 %v1590, 0.6931472
        %v1592 = vadd.f32 %v1577, %v1405
        %v1593 = vadd.f32 %v1579, %v1407
        %v1594 = vadd.f32 %v1581, %v1410
        %v1595 = vadd.f32 %v1583, %v1412
        %v1596 = vadd.f32 %v1585, %v1415
        %v1597 = vadd.f32 %v1587, %v1417
        %v1598 = vadd.f32 %v1589, %v1420
        %v1599 = vadd.f32 %v1591, %v1422
        %v1600 = vsub.f32 1.0, %v1470
        %v1601 = vsub.f32 1.0, %v1485
        %v1602 = vsub.f32 1.0, %v1500
        %v1603 = vsub.f32 1.0, %v1515
        %v1604 = vsub.f32 1.0, %v1530
        %v1605 = vsub.f32 1.0, %v1545
        %v1606 = vsub.f32 1.0, %v1560
        %v1607 = vsub.f32 1.0, %v1575
        %v1608 = vmul.f32 %v1470, %v1470
        %v1609 = vmul.f32 %v1485, %v1485
        %v1610 = vmul.f32 %v1500, %v1500
        %v1611 = vmul.f32 %v1515, %v1515
        %v1612 = vmul.f32 %v1530, %v1530
        %v1613 = vmul.f32 %v1545, %v1545
        %v1614 = vmul.f32 %v1560, %v1560
        %v1615 = vmul.f32 %v1575, %v1575
        %v1616 = vmul.f32 %v1600, %v1600
        %v1617 = vmul.f32 %v1601, %v1601
        %v1618 = vmul.f32 %v1602, %v1602
        %v1619 = vmul.f32 %v1603, %v1603
        %v1620 = vmul.f32 %v1604, %v1604
        %v1621 = vmul.f32 %v1605, %v1605
        %v1622 = vmul.f32 %v1606, %v1606
        %v1623 = vmul.f32 %v1607, %v1607
        %v1624 = vmul.f32 %v1616, 0.25
        %v1625 = vmul.f32 %v1617, 0.25
        %v1626 = vmul.f32 %v1618, 0.25
        %v1627 = vmul.f32 %v1619, 0.25
        %v1628 = vmul.f32 %v1620, 0.25
        %v1629 = vmul.f32 %v1621, 0.25
        %v1630 = vmul.f32 %v1622, 0.25
        %v1631 = vmul.f32 %v1623, 0.25
        %v1632 = vmul.f32 %v1624, %v1577
        %v1633 = vmul.f32 %v1625, %v1579
        %v1634 = vmul.f32 %v1626, %v1581
        %v1635 = vmul.f32 %v1627, %v1583
        %v1636 = vmul.f32 %v1628, %v1585
        %v1637 = vmul.f32 %v1629, %v1587
        %v1638 = vmul.f32 %v1630, %v1589
        %v1639 = vmul.f32 %v1631, %v1591
        %v1640 = vmul.f32 %v1608, 0.75
        %v1641 = vmul.f32 %v1609, 0.75
        %v1642 = vmul.f32 %v1610, 0.75
        %v1643 = vmul.f32 %v1611, 0.75
        %v1644 = vmul.f32 %v1612, 0.75
        %v1645 = vmul.f32 %v1613, 0.75
        %v1646 = vmul.f32 %v1614, 0.75
        %v1647 = vmul.f32 %v1615, 0.75
        %v1648 = vmul.f32 %v1640, %v1592
        %v1649 = vmul.f32 %v1641, %v1593
        %v1650 = vmul.f32 %v1642, %v1594
        %v1651 = vmul.f32 %v1643, %v1595
        %v1652 = vmul.f32 %v1644, %v1596
        %v1653 = vmul.f32 %v1645, %v1597
        %v1654 = vmul.f32 %v1646, %v1598
        %v1655 = vmul.f32 %v1647, %v1599
        %v1656 = vsub.f32 %v1632, %v1648
        %v1657 = vsub.f32 %v1633, %v1649
        %v1658 = vsub.f32 %v1634, %v1650
        %v1659 = vsub.f32 %v1635, %v1651
        %v1660 = vsub.f32 %v1636, %v1652
        %v1661 = vsub.f32 %v1637, %v1653
        %v1662 = vsub.f32 %v1638, %v1654
        %v1663 = vsub.f32 %v1639, %v1655
        %v1664 = vadd.f32 %v1656, 0.0
        %v1665 = vadd.f32 %v1657, 0.0
        %v1666 = vadd.f32 %v1658, 0.0
        %v1667 = vadd.f32 %v1659, 0.0
        %v1668 = vadd.f32 %v1660, 0.0
        %v1669 = vadd.f32 %v1661, 0.0
        %v1670 = vadd.f32 %v1662, 0.0
        %v1671 = vadd.f32 %v1663, 0.0
        %s1672 = scalar_lea.vmem %s288, 32 [#allocation2]
        %v1673 = vld [vmem:[%s1672] sm:$0xf]
        %v1674 = vld [vmem:[%s1672 + $0x4] sm:$0xf]
        %v1675 = vld [vmem:[%s1672 + $0x8] sm:$0xf]
        %v1676 = vld [vmem:[%s1672 + $0xc] sm:$0xf]
        %v1677 = vld [vmem:[%s1672 + $0x10] sm:$0xf]
        %v1678 = vld [vmem:[%s1672 + $0x14] sm:$0xf]
        %v1679 = vld [vmem:[%s1672 + $0x18] sm:$0xf]
        %v1680 = vld [vmem:[%s1672 + $0x1c] sm:$0xf]
        %s1681 = scalar_lea.vmem %s3, 48
        %v1682 = vld [vmem:[%s1681] sm:$0xf]
        %v1683 = vld [vmem:[%s1681 + $0x4] sm:$0xf]
        %v1684 = vld [vmem:[%s1681 + $0x8] sm:$0xf]
        %v1685 = vld [vmem:[%s1681 + $0xc] sm:$0xf]
        %v1686 = vld [vmem:[%s1681 + $0x10] sm:$0xf]
        %v1687 = vld [vmem:[%s1681 + $0x14] sm:$0xf]
        %v1688 = vld [vmem:[%s1681 + $0x18] sm:$0xf]
        %v1689 = vld [vmem:[%s1681 + $0x1c] sm:$0xf]
        %v1690 = vld [vmem:[%s1681 + $0x20] sm:$0xf]
        %v1691 = vld [vmem:[%s1681 + $0x24] sm:$0xf]
        %v1692 = vld [vmem:[%s1681 + $0x28] sm:$0xf]
        %v1693 = vld [vmem:[%s1681 + $0x2c] sm:$0xf]
        %v1702 = vunpack.c.l.b16 %v1673
        %v1703 = vunpack.c.l.b16 %v1674
        %v1704 = vunpack.c.l.b16 %v1675
        %v1705 = vunpack.c.l.b16 %v1676
        %v1706 = vunpack.c.l.b16 %v1677
        %v1707 = vunpack.c.l.b16 %v1678
        %v1708 = vunpack.c.l.b16 %v1679
        %v1709 = vunpack.c.l.b16 %v1680
        %v1710 = vpack.c.b16 %v1703, %v1702
        %v1711 = vpack.c.b16 %v1705, %v1704
        %v1712 = vpack.c.b16 %v1707, %v1706
        %v1713 = vpack.c.b16 %v1709, %v1708
        %v1726 = vunpack.c.l.b16 %v1682
        %v1727 = vunpack.c.l.b16 %v1683
        %v1728 = vunpack.c.l.b16 %v1684
        %v1729 = vunpack.c.l.b16 %v1685
        %v1730 = vunpack.c.l.b16 %v1686
        %v1731 = vunpack.c.l.b16 %v1687
        %v1732 = vunpack.c.l.b16 %v1688
        %v1733 = vunpack.c.l.b16 %v1689
        %v1734 = vunpack.c.l.b16 %v1690
        %v1735 = vunpack.c.l.b16 %v1691
        %v1736 = vunpack.c.l.b16 %v1692
        %v1737 = vunpack.c.l.b16 %v1693
        %v1738 = vpack.c.b16 %v1727, %v1726
        %v1739 = vpack.c.b16 %v1729, %v1728
        %v1740 = vpack.c.b16 %v1731, %v1730
        %v1741 = vpack.c.b16 %v1733, %v1732
        %v1742 = vpack.c.b16 %v1735, %v1734
        %v1743 = vpack.c.b16 %v1737, %v1736
        %v1751 = vsel %vm1382, %v1710, 0
        %v1754 = vsel %vm1382, %v1711, 0
        %v1757 = vsel %vm1382, %v1712, 0
        %v1760 = vsel %vm1382, %v1713, 0
        %1762 = vmatpush.bf16.msra.mxu0 0
        %1763 = vmatpush.bf16.msra.mxu0 0
        %1764 = vmatpush.bf16.msra.mxu0 %v1743
        %1765 = vmatpush.bf16.msra.mxu0 %v1742
        %1766 = vmatpush.bf16.msra.mxu0 %v1741
        %1767 = vmatpush.bf16.msra.mxu0 %v1740
        %1768 = vmatpush.bf16.msra.mxu0 %v1739
        %1769 = vmatpush.bf16.msra.mxu0 %v1738
        %1770 = vmatmul.bf16.gmra.mxu0 %v1751
        %v1771 = vpop.f32.mrf.mxu0
        %v1772 = vadd.f32 0.0, %v1771
        %v1773 = vpop.f32.mrf.mxu0
        %v1774 = vadd.f32 0.0, %v1773
        %1775 = vmatmul.bf16.gmra.mxu0 %v1754
        %v1776 = vpop.f32.mrf.mxu0
        %v1777 = vadd.f32 0.0, %v1776
        %v1778 = vpop.f32.mrf.mxu0
        %v1779 = vadd.f32 0.0, %v1778
        %1780 = vmatmul.bf16.gmra.mxu0 %v1757
        %v1781 = vpop.f32.mrf.mxu0
        %v1782 = vadd.f32 0.0, %v1781
        %v1783 = vpop.f32.mrf.mxu0
        %v1784 = vadd.f32 0.0, %v1783
        %1785 = vmatmul.bf16.gmra.mxu0 %v1760
        %v1786 = vpop.f32.mrf.mxu0
        %v1787 = vadd.f32 0.0, %v1786
        %v1788 = vpop.f32.mrf.mxu0
        %v1789 = vadd.f32 0.0, %v1788
        %1790 = vdwg.mxu0
        %v1791 = vsub.f32 0.0, %v1772
        %v1792 = vsub.f32 0.0, %v1774
        %v1793 = vsub.f32 0.0, %v1777
        %v1794 = vsub.f32 0.0, %v1779
        %v1795 = vsub.f32 0.0, %v1782
        %v1796 = vsub.f32 0.0, %v1784
        %v1797 = vsub.f32 0.0, %v1787
        %v1798 = vsub.f32 0.0, %v1789
        %v1799 = vmul.f32 %v1791, 1.442695
        %v1800 = vpow.pop %v1799
        %v1801 = vmul.f32 %v1792, 1.442695
        %v1802 = vpow.pop %v1801
        %v1803 = vmul.f32 %v1793, 1.442695
        %v1804 = vpow.pop %v1803
        %v1805 = vmul.f32 %v1794, 1.442695
        %v1806 = vpow.pop %v1805
        %v1807 = vmul.f32 %v1795, 1.442695
        %v1808 = vpow.pop %v1807
        %v1809 = vmul.f32 %v1796, 1.442695
        %v1810 = vpow.pop %v1809
        %v1811 = vmul.f32 %v1797, 1.442695
        %v1812 = vpow.pop %v1811
        %v1813 = vmul.f32 %v1798, 1.442695
        %v1814 = vpow.pop %v1813
        %v1815 = vadd.f32 %v1800, 1.0
        %v1816 = vadd.f32 %v1802, 1.0
        %v1817 = vadd.f32 %v1804, 1.0
        %v1818 = vadd.f32 %v1806, 1.0
        %v1819 = vadd.f32 %v1808, 1.0
        %v1820 = vadd.f32 %v1810, 1.0
        %v1821 = vadd.f32 %v1812, 1.0
        %v1822 = vadd.f32 %v1814, 1.0
        %v1823 = vrcp.pop %v1815
        %v1824 = vmul.f32 %v1815, %v1823
        %v1825 = vsub.f32 1.0, %v1824
        %v1826 = vmul.f32 %v1823, %v1825
        %v1827 = vadd.f32 %v1823, %v1826
        %vm1828 = vweird.f32 %v1815
        %vm1829 = vweird.f32 %v1823
        %vm1830 = vmor %vm1828, %vm1829
        %v1831 = vsel %vm1830, %v1823, %v1827
        %v1832 = vand.u32 2147483647, %v1815
        %vm1833 = vcmp.eq.f32.partialorder %v1832, 8.507059e+37
        %v1834 = vand.u32 %v1815, 2147483648
        %v1835 = vor.u32 1.1754944e-38, %v1834
        %v1836 = vsel %vm1833, %v1835, %v1831
        %v1837 = vmul.f32 1.0, %v1836
        %v1838 = vrcp.pop %v1816
        %v1839 = vmul.f32 %v1816, %v1838
        %v1840 = vsub.f32 1.0, %v1839
        %v1841 = vmul.f32 %v1838, %v1840
        %v1842 = vadd.f32 %v1838, %v1841
        %vm1843 = vweird.f32 %v1816
        %vm1844 = vweird.f32 %v1838
        %vm1845 = vmor %vm1843, %vm1844
        %v1846 = vsel %vm1845, %v1838, %v1842
        %v1847 = vand.u32 2147483647, %v1816
        %vm1848 = vcmp.eq.f32.partialorder %v1847, 8.507059e+37
        %v1849 = vand.u32 %v1816, 2147483648
        %v1850 = vor.u32 1.1754944e-38, %v1849
        %v1851 = vsel %vm1848, %v1850, %v1846
        %v1852 = vmul.f32 1.0, %v1851
        %v1853 = vrcp.pop %v1817
        %v1854 = vmul.f32 %v1817, %v1853
        %v1855 = vsub.f32 1.0, %v1854
        %v1856 = vmul.f32 %v1853, %v1855
        %v1857 = vadd.f32 %v1853, %v1856
        %vm1858 = vweird.f32 %v1817
        %vm1859 = vweird.f32 %v1853
        %vm1860 = vmor %vm1858, %vm1859
        %v1861 = vsel %vm1860, %v1853, %v1857
        %v1862 = vand.u32 2147483647, %v1817
        %vm1863 = vcmp.eq.f32.partialorder %v1862, 8.507059e+37
        %v1864 = vand.u32 %v1817, 2147483648
        %v1865 = vor.u32 1.1754944e-38, %v1864
        %v1866 = vsel %vm1863, %v1865, %v1861
        %v1867 = vmul.f32 1.0, %v1866
        %v1868 = vrcp.pop %v1818
        %v1869 = vmul.f32 %v1818, %v1868
        %v1870 = vsub.f32 1.0, %v1869
        %v1871 = vmul.f32 %v1868, %v1870
        %v1872 = vadd.f32 %v1868, %v1871
        %vm1873 = vweird.f32 %v1818
        %vm1874 = vweird.f32 %v1868
        %vm1875 = vmor %vm1873, %vm1874
        %v1876 = vsel %vm1875, %v1868, %v1872
        %v1877 = vand.u32 2147483647, %v1818
        %vm1878 = vcmp.eq.f32.partialorder %v1877, 8.507059e+37
        %v1879 = vand.u32 %v1818, 2147483648
        %v1880 = vor.u32 1.1754944e-38, %v1879
        %v1881 = vsel %vm1878, %v1880, %v1876
        %v1882 = vmul.f32 1.0, %v1881
        %v1883 = vrcp.pop %v1819
        %v1884 = vmul.f32 %v1819, %v1883
        %v1885 = vsub.f32 1.0, %v1884
        %v1886 = vmul.f32 %v1883, %v1885
        %v1887 = vadd.f32 %v1883, %v1886
        %vm1888 = vweird.f32 %v1819
        %vm1889 = vweird.f32 %v1883
        %vm1890 = vmor %vm1888, %vm1889
        %v1891 = vsel %vm1890, %v1883, %v1887
        %v1892 = vand.u32 2147483647, %v1819
        %vm1893 = vcmp.eq.f32.partialorder %v1892, 8.507059e+37
        %v1894 = vand.u32 %v1819, 2147483648
        %v1895 = vor.u32 1.1754944e-38, %v1894
        %v1896 = vsel %vm1893, %v1895, %v1891
        %v1897 = vmul.f32 1.0, %v1896
        %v1898 = vrcp.pop %v1820
        %v1899 = vmul.f32 %v1820, %v1898
        %v1900 = vsub.f32 1.0, %v1899
        %v1901 = vmul.f32 %v1898, %v1900
        %v1902 = vadd.f32 %v1898, %v1901
        %vm1903 = vweird.f32 %v1820
        %vm1904 = vweird.f32 %v1898
        %vm1905 = vmor %vm1903, %vm1904
        %v1906 = vsel %vm1905, %v1898, %v1902
        %v1907 = vand.u32 2147483647, %v1820
        %vm1908 = vcmp.eq.f32.partialorder %v1907, 8.507059e+37
        %v1909 = vand.u32 %v1820, 2147483648
        %v1910 = vor.u32 1.1754944e-38, %v1909
        %v1911 = vsel %vm1908, %v1910, %v1906
        %v1912 = vmul.f32 1.0, %v1911
        %v1913 = vrcp.pop %v1821
        %v1914 = vmul.f32 %v1821, %v1913
        %v1915 = vsub.f32 1.0, %v1914
        %v1916 = vmul.f32 %v1913, %v1915
        %v1917 = vadd.f32 %v1913, %v1916
        %vm1918 = vweird.f32 %v1821
        %vm1919 = vweird.f32 %v1913
        %vm1920 = vmor %vm1918, %vm1919
        %v1921 = vsel %vm1920, %v1913, %v1917
        %v1922 = vand.u32 2147483647, %v1821
        %vm1923 = vcmp.eq.f32.partialorder %v1922, 8.507059e+37
        %v1924 = vand.u32 %v1821, 2147483648
        %v1925 = vor.u32 1.1754944e-38, %v1924
        %v1926 = vsel %vm1923, %v1925, %v1921
        %v1927 = vmul.f32 1.0, %v1926
        %v1928 = vrcp.pop %v1822
        %v1929 = vmul.f32 %v1822, %v1928
        %v1930 = vsub.f32 1.0, %v1929
        %v1931 = vmul.f32 %v1928, %v1930
        %v1932 = vadd.f32 %v1928, %v1931
        %vm1933 = vweird.f32 %v1822
        %vm1934 = vweird.f32 %v1928
        %vm1935 = vmor %vm1933, %vm1934
        %v1936 = vsel %vm1935, %v1928, %v1932
        %v1937 = vand.u32 2147483647, %v1822
        %vm1938 = vcmp.eq.f32.partialorder %v1937, 8.507059e+37
        %v1939 = vand.u32 %v1822, 2147483648
        %v1940 = vor.u32 1.1754944e-38, %v1939
        %v1941 = vsel %vm1938, %v1940, %v1936
        %v1942 = vmul.f32 1.0, %v1941
        %v1943 = vlog2.pop %v1815
        %v1944 = vmul.f32 %v1943, 0.6931472
        %v1945 = vlog2.pop %v1816
        %v1946 = vmul.f32 %v1945, 0.6931472
        %v1947 = vlog2.pop %v1817
        %v1948 = vmul.f32 %v1947, 0.6931472
        %v1949 = vlog2.pop %v1818
        %v1950 = vmul.f32 %v1949, 0.6931472
        %v1951 = vlog2.pop %v1819
        %v1952 = vmul.f32 %v1951, 0.6931472
        %v1953 = vlog2.pop %v1820
        %v1954 = vmul.f32 %v1953, 0.6931472
        %v1955 = vlog2.pop %v1821
        %v1956 = vmul.f32 %v1955, 0.6931472
        %v1957 = vlog2.pop %v1822
        %v1958 = vmul.f32 %v1957, 0.6931472
        %v1959 = vadd.f32 %v1944, %v1772
        %v1960 = vadd.f32 %v1946, %v1774
        %v1961 = vadd.f32 %v1948, %v1777
        %v1962 = vadd.f32 %v1950, %v1779
        %v1963 = vadd.f32 %v1952, %v1782
        %v1964 = vadd.f32 %v1954, %v1784
        %v1965 = vadd.f32 %v1956, %v1787
        %v1966 = vadd.f32 %v1958, %v1789
        %v1967 = vsub.f32 1.0, %v1837
        %v1968 = vsub.f32 1.0, %v1852
        %v1969 = vsub.f32 1.0, %v1867
        %v1970 = vsub.f32 1.0, %v1882
        %v1971 = vsub.f32 1.0, %v1897
        %v1972 = vsub.f32 1.0, %v1912
        %v1973 = vsub.f32 1.0, %v1927
        %v1974 = vsub.f32 1.0, %v1942
        %v1975 = vmul.f32 %v1837, %v1837
        %v1976 = vmul.f32 %v1852, %v1852
        %v1977 = vmul.f32 %v1867, %v1867
        %v1978 = vmul.f32 %v1882, %v1882
        %v1979 = vmul.f32 %v1897, %v1897
        %v1980 = vmul.f32 %v1912, %v1912
        %v1981 = vmul.f32 %v1927, %v1927
        %v1982 = vmul.f32 %v1942, %v1942
        %v1983 = vmul.f32 %v1967, %v1967
        %v1984 = vmul.f32 %v1968, %v1968
        %v1985 = vmul.f32 %v1969, %v1969
        %v1986 = vmul.f32 %v1970, %v1970
        %v1987 = vmul.f32 %v1971, %v1971
        %v1988 = vmul.f32 %v1972, %v1972
        %v1989 = vmul.f32 %v1973, %v1973
        %v1990 = vmul.f32 %v1974, %v1974
        %v1991 = vmul.f32 %v1983, 0.25
        %v1992 = vmul.f32 %v1984, 0.25
        %v1993 = vmul.f32 %v1985, 0.25
        %v1994 = vmul.f32 %v1986, 0.25
        %v1995 = vmul.f32 %v1987, 0.25
        %v1996 = vmul.f32 %v1988, 0.25
        %v1997 = vmul.f32 %v1989, 0.25
        %v1998 = vmul.f32 %v1990, 0.25
        %v1999 = vmul.f32 %v1991, %v1944
        %v2000 = vmul.f32 %v1992, %v1946
        %v2001 = vmul.f32 %v1993, %v1948
        %v2002 = vmul.f32 %v1994, %v1950
        %v2003 = vmul.f32 %v1995, %v1952
        %v2004 = vmul.f32 %v1996, %v1954
        %v2005 = vmul.f32 %v1997, %v1956
        %v2006 = vmul.f32 %v1998, %v1958
        %v2007 = vmul.f32 %v1975, 0.75
        %v2008 = vmul.f32 %v1976, 0.75
        %v2009 = vmul.f32 %v1977, 0.75
        %v2010 = vmul.f32 %v1978, 0.75
        %v2011 = vmul.f32 %v1979, 0.75
        %v2012 = vmul.f32 %v1980, 0.75
        %v2013 = vmul.f32 %v1981, 0.75
        %v2014 = vmul.f32 %v1982, 0.75
        %v2015 = vmul.f32 %v2007, %v1959
        %v2016 = vmul.f32 %v2008, %v1960
        %v2017 = vmul.f32 %v2009, %v1961
        %v2018 = vmul.f32 %v2010, %v1962
        %v2019 = vmul.f32 %v2011, %v1963
        %v2020 = vmul.f32 %v2012, %v1964
        %v2021 = vmul.f32 %v2013, %v1965
        %v2022 = vmul.f32 %v2014, %v1966
        %v2023 = vsub.f32 %v1999, %v2015
        %v2024 = vsub.f32 %v2000, %v2016
        %v2025 = vsub.f32 %v2001, %v2017
        %v2026 = vsub.f32 %v2002, %v2018
        %v2027 = vsub.f32 %v2003, %v2019
        %v2028 = vsub.f32 %v2004, %v2020
        %v2029 = vsub.f32 %v2005, %v2021
        %v2030 = vsub.f32 %v2006, %v2022
        %v2031 = vmul.f32 %v2023, 0.5
        %v2032 = vmul.f32 %v2024, 0.5
        %v2033 = vmul.f32 %v2025, 0.5
        %v2034 = vmul.f32 %v2026, 0.5
        %v2035 = vmul.f32 %v2027, 0.5
        %v2036 = vmul.f32 %v2028, 0.5
        %v2037 = vmul.f32 %v2029, 0.5
        %v2038 = vmul.f32 %v2030, 0.5
        %v2039 = vadd.f32 %v1664, %v2031
        %v2040 = vadd.f32 %v1665, %v2032
        %v2041 = vadd.f32 %v1666, %v2033
        %v2042 = vadd.f32 %v1667, %v2034
        %v2043 = vadd.f32 %v1668, %v2035
        %v2044 = vadd.f32 %v1669, %v2036
        %v2045 = vadd.f32 %v1670, %v2037
        %v2046 = vadd.f32 %v1671, %v2038
        %v2047 = vadd.f32 %v554, %v2039
        %v2048 = vadd.f32 %v555, %v2040
        %v2049 = vadd.f32 %v556, %v2041
        %v2050 = vadd.f32 %v557, %v2042
        %v2051 = vadd.f32 %v558, %v2043
        %v2052 = vadd.f32 %v559, %v2044
        %v2053 = vadd.f32 %v560, %v2045
        %v2054 = vadd.f32 %v561, %v2046
        %v2055 = vadd.f32 %v2047, %v1298
        %v2056 = vadd.f32 %v2048, %v1299
        %v2057 = vadd.f32 %v2049, %v1300
        %v2058 = vadd.f32 %v2050, %v1301
        %v2059 = vadd.f32 %v2051, %v1302
        %v2060 = vadd.f32 %v2052, %v1303
        %v2061 = vadd.f32 %v2053, %v1304
        %v2062 = vadd.f32 %v2054, %v1305
        %2063 = vst [vmem:[%s315] sm:$0xff] %v2055
        %2064 = vst [vmem:[%s315 + $0x8] sm:$0xff] %v2056
        %2065 = vst [vmem:[%s315 + $0x10] sm:$0xff] %v2057
        %2066 = vst [vmem:[%s315 + $0x18] sm:$0xff] %v2058
        %2067 = vst [vmem:[%s315 + $0x20] sm:$0xff] %v2059
        %2068 = vst [vmem:[%s315 + $0x28] sm:$0xff] %v2060
        %2069 = vst [vmem:[%s315 + $0x30] sm:$0xff] %v2061
        %2070 = vst [vmem:[%s315 + $0x38] sm:$0xff] %v2062
        %s2071 = sand.u32 %s120, 1
        %s2072 = scalar_lea.sflag [#allocation4], %s2071
        %s2073 = sand.u32 %s120, 1
        %s2074 = smul.addr %s2073, 64
        %s2075 = scalar_lea.vmem [#allocation3], %s2074
        // Predicated region
        $region78: #{tpu_custom_call.1} parent=72 // pred_check
          %p2076 = pneg %p130
        $region79: #{tpu_custom_call.1} parent=72 // pred_check_branch
          %2078 = sbr.rel (%p2076) target = $region81
        $region80: #{tpu_custom_call.1} parent=72 // pred_region
          %s2079 = smul.u32 8, %s18
          %2081 = vsyncadd %s2072, 0
          %s2082 = smul.addr %s2079, 8
          %s2083 = scalar_lea.hbm %s4, %s2082
          %s2084 = sshll.u32 %s2075, 4
          %s2085 = int_to_ptr.vmem [resolvable:$true] %s2084
          %s2086 = sshll.u32 %s2083, 4
          %s2087 = int_to_ptr.hbm [resolvable:$true] %s2086
          %2092 = dma.vmem_to_hbm [thread:$0]  %s2085, 1024, %s2087, %s2072, 128, 128, 8
        $region81: #{tpu_custom_call.1} parent=72 // pred_fallthru
          _
      $region73: #{tpu_custom_call.1} parent=5 // pred_fallthru
        _
      %p2093 = scmp.le.s32.totalorder 2, %s13
      // Predicated region
      $region82: #{tpu_custom_call.1} parent=5 // pred_check
        %p2094 = pneg %p2093
      $region83: #{tpu_custom_call.1} parent=5 // pred_check_branch
        %2096 = sbr.rel (%p2094) target = $region85
      $region84: #{tpu_custom_call.1} parent=5 // pred_region
        %s2097 = ssub.s32 %s13, 2
        // Predicated region
        $region86: #{tpu_custom_call.1} parent=84 // pred_check
          %p2098 = pneg %p136
        $region87: #{tpu_custom_call.1} parent=84 // pred_check_branch
          %2100 = sbr.rel (%p2098) target = $region89
        $region88: #{tpu_custom_call.1} parent=84 // pred_region
          %s2101 = sand.u32 %s121, 1
          %s2102 = scalar_lea.sflag [#allocation4], %s2101
          %s2103 = sand.u32 %s121, 1
          %s2104 = smul.addr %s2103, 64
          %s2105 = scalar_lea.vmem [#allocation3], %s2104
          %2107 = dma.done %s2102, 1024
        $region89: #{tpu_custom_call.1} parent=84 // pred_fallthru
          _
      $region85: #{tpu_custom_call.1} parent=5 // pred_fallthru
        _
    $region6: #{tpu_custom_call.1} parent=1 // loop_footer
      %s17 = sadd.s32 1, %s13
    $region7: #{tpu_custom_call.1} parent=1 // loop_footer_branch
      %12 = sbr.rel target = $region3
    $region8: #{tpu_custom_call.1} parent=1 // loop_exit
      _
    %2108 = vsyncpa [#allocation4], 1
    %s2109 = scalar_lea.sflag [#allocation4], 1
    %2110 = vsyncpa %s2109, 1

</llo_original>
